<compile_context>
chip_gen: v5e
topology: v5e:2x2
jax: 0.10.0
libtpu: 0.0.40
codegen_flags: <defaults>
</compile_context>

<pallas_src>
import jax
import jax.numpy as jnp
from jax.experimental import pallas as pl
from jax.experimental.pallas import tpu as pltpu


def _round_up(x, m):
    return (x + m - 1) // m * m


def _linear_ln_relu(x_bf16, w_bf16, b, gamma, beta, eps=1e-5):
    """Linear (bf16 MXU, f32 acc) -> LayerNorm (f32) -> ReLU; returns bf16."""
    h = jnp.dot(x_bf16, w_bf16, preferred_element_type=jnp.float32) + b
    # Single-pass statistics: var = E[h^2] - E[h]^2  (biased, PyTorch default).
    mu = jnp.mean(h, axis=-1, keepdims=True)
    mu2 = jnp.mean(h * h, axis=-1, keepdims=True)
    var = jnp.maximum(mu2 - mu * mu, 0.0)
    hn = (h - mu) * jax.lax.rsqrt(var + eps) * gamma + beta
    return jnp.maximum(hn, 0.0).astype(jnp.bfloat16)


def generator_kernel(z_ref,
                     w1_ref, b1_ref, g1_ref, be1_ref,
                     w2_ref, b2_ref, g2_ref, be2_ref,
                     w3_ref, b3_ref, g3_ref, be3_ref,
                     w4_ref, b4_ref,
                     out_ref):
    x = z_ref[...].astype(jnp.bfloat16)
    h = _linear_ln_relu(x, w1_ref[...], b1_ref[...], g1_ref[...], be1_ref[...])
    # TODO(synk): Dropout(0.3) reproduced as identity (eval-mode semantics).
    h = _linear_ln_relu(h, w2_ref[...], b2_ref[...], g2_ref[...], be2_ref[...])
    h = _linear_ln_relu(h, w3_ref[...], b3_ref[...], g3_ref[...], be3_ref[...])
    y = jnp.dot(h, w4_ref[...], preferred_element_type=jnp.float32) + b4_ref[...]
    out_ref[...] = jnp.tanh(y)


def init_generator_params(key, latent_dim, sequence_length, num_features):
    """Deterministic f32 parameter init (shapes match the PyTorch module)."""
    dims = [latent_dim, 256, 512, 1024, sequence_length * num_features]
    params = []
    for i in range(4):
        key, kw, kb = jax.random.split(key, 3)
        bound = 1.0 / jnp.sqrt(dims[i])
        w = jax.random.uniform(kw, (dims[i], dims[i + 1]), jnp.float32,
                               -bound, bound)
        b = jax.random.uniform(kb, (1, dims[i + 1]), jnp.float32,
                               -bound, bound)
        params.append((w, b))
        if i < 3:  # LayerNorm after the first three Linear layers
            params.append((jnp.ones((1, dims[i + 1]), jnp.float32),
                           jnp.zeros((1, dims[i + 1]), jnp.float32)))
    (w1, b1), (g1, be1), (w2, b2), (g2, be2), (w3, b3), (g3, be3), (w4, b4) = params
    return (w1, b1, g1, be1, w2, b2, g2, be2, w3, b3, g3, be3, w4, b4)


def _cast_mxu_operands(params):
    """Cast matmul weights to bf16 once; keep biases / LN params in f32."""
    (w1, b1, g1, be1, w2, b2, g2, be2, w3, b3, g3, be3, w4, b4) = params
    bf = lambda w: w.astype(jnp.bfloat16)
    return (bf(w1), b1, g1, be1, bf(w2), b2, g2, be2,
            bf(w3), b3, g3, be3, bf(w4), b4)


def generator_forward(z, params, sequence_length, num_features,
                      block_batch=256):
    # block_batch: 256 is a good default for v6e/v7x; use 128 on v5e.
    B, latent_dim = z.shape
    out_dim = sequence_length * num_features

    # Sublane-aligned batch tile; pad the batch so the grid divides evenly.
    tb = min(block_batch, _round_up(B, 8))
    pad_b = _round_up(B, tb)
    if pad_b != B:
        z = jnp.pad(z, ((0, pad_b - B), (0, 0)))

    kparams = _cast_mxu_operands(params)

    # Activation tiles move with the batch grid; parameters stay resident
    # (constant block index => fetched once, no per-step re-DMA).
    in_specs = [pl.BlockSpec((tb, latent_dim), lambda i: (i, 0))]
    for p in kparams:
        in_specs.append(pl.BlockSpec(p.shape, lambda i: (0, 0)))

    flat = pl.pallas_call(
        generator_kernel,
        out_shape=jax.ShapeDtypeStruct((pad_b, out_dim), jnp.float32),
        grid=(pad_b // tb,),
        in_specs=in_specs,
        out_specs=pl.BlockSpec((tb, out_dim), lambda i: (i, 0)),
        compiler_params=pltpu.CompilerParams(
            dimension_semantics=("parallel",)),
    )(z, *kparams)

    return flat[:B].reshape(B, -1, num_features)


if __name__ == "__main__":
    latent_dim = 32
    sequence_length = 8
    num_features = 4
    batch = 2

    key = jax.random.PRNGKey(0)
    k_params, k_z = jax.random.split(key)
    params = init_generator_params(k_params, latent_dim, sequence_length,
                                   num_features)
    z = jax.random.normal(k_z, (batch, latent_dim), jnp.float32)

    out = generator_forward(z, params, sequence_length, num_features)
    out = jax.block_until_ready(out)
    assert out.shape == (batch, sequence_length, num_features), out.shape
    assert bool(jnp.all(jnp.isfinite(out)))
    assert bool(jnp.all(jnp.abs(out) <= 1.0))  # tanh range
    print("KERNEL_OK")
</pallas_src>

<mosaic_0001>
module attributes {stable_mosaic.version = 11 : i64} {
  func.func @generator_kernel(%arg0: i32, %arg1: memref<8x32xf32, #tpu.memory_space<vmem>>, %arg2: memref<32x256xbf16, #tpu.memory_space<vmem>>, %arg3: memref<1x256xf32, #tpu.memory_space<vmem>>, %arg4: memref<1x256xf32, #tpu.memory_space<vmem>>, %arg5: memref<1x256xf32, #tpu.memory_space<vmem>>, %arg6: memref<256x512xbf16, #tpu.memory_space<vmem>>, %arg7: memref<1x512xf32, #tpu.memory_space<vmem>>, %arg8: memref<1x512xf32, #tpu.memory_space<vmem>>, %arg9: memref<1x512xf32, #tpu.memory_space<vmem>>, %arg10: memref<512x1024xbf16, #tpu.memory_space<vmem>>, %arg11: memref<1x1024xf32, #tpu.memory_space<vmem>>, %arg12: memref<1x1024xf32, #tpu.memory_space<vmem>>, %arg13: memref<1x1024xf32, #tpu.memory_space<vmem>>, %arg14: memref<1024x32xbf16, #tpu.memory_space<vmem>>, %arg15: memref<1x32xf32, #tpu.memory_space<vmem>>, %arg16: memref<8x32xf32, #tpu.memory_space<vmem>>) attributes {dimension_semantics = [#tpu.dimension_semantics<parallel>], iteration_bounds = array<i64: 1>, scalar_prefetch = 0 : i64, scratch_operands = 0 : i64, tpu.core_type = #tpu.core_type<tc>, window_params = [{transform_indices = @transform_0, window_bounds = array<i64: 8, 32>}, {pipeline_mode = #tpu.pipeline_mode<synchronous>, transform_indices = @transform_1, window_bounds = array<i64: 32, 256>}, {pipeline_mode = #tpu.pipeline_mode<synchronous>, transform_indices = @transform_2, window_bounds = array<i64: 1, 256>}, {pipeline_mode = #tpu.pipeline_mode<synchronous>, transform_indices = @transform_3, window_bounds = array<i64: 1, 256>}, {pipeline_mode = #tpu.pipeline_mode<synchronous>, transform_indices = @transform_4, window_bounds = array<i64: 1, 256>}, {pipeline_mode = #tpu.pipeline_mode<synchronous>, transform_indices = @transform_5, window_bounds = array<i64: 256, 512>}, {pipeline_mode = #tpu.pipeline_mode<synchronous>, transform_indices = @transform_6, window_bounds = array<i64: 1, 512>}, {pipeline_mode = #tpu.pipeline_mode<synchronous>, transform_indices = @transform_7, window_bounds = array<i64: 1, 512>}, {pipeline_mode = #tpu.pipeline_mode<synchronous>, transform_indices = @transform_8, window_bounds = array<i64: 1, 512>}, {pipeline_mode = #tpu.pipeline_mode<synchronous>, transform_indices = @transform_9, window_bounds = array<i64: 512, 1024>}, {pipeline_mode = #tpu.pipeline_mode<synchronous>, transform_indices = @transform_10, window_bounds = array<i64: 1, 1024>}, {pipeline_mode = #tpu.pipeline_mode<synchronous>, transform_indices = @transform_11, window_bounds = array<i64: 1, 1024>}, {pipeline_mode = #tpu.pipeline_mode<synchronous>, transform_indices = @transform_12, window_bounds = array<i64: 1, 1024>}, {pipeline_mode = #tpu.pipeline_mode<synchronous>, transform_indices = @transform_13, window_bounds = array<i64: 1024, 32>}, {pipeline_mode = #tpu.pipeline_mode<synchronous>, transform_indices = @transform_14, window_bounds = array<i64: 1, 32>}, {transform_indices = @transform_15, window_bounds = array<i64: 8, 32>}]} {
    %c0 = arith.constant 0 : index
    %c0_0 = arith.constant 0 : index
    %0 = vector.load %arg1[%c0, %c0_0] : memref<8x32xf32, #tpu.memory_space<vmem>>, vector<8x32xf32>
    %1 = arith.truncf %0 : vector<8x32xf32> to vector<8x32xbf16>
    %c0_1 = arith.constant 0 : index
    %c0_2 = arith.constant 0 : index
    %2 = vector.load %arg2[%c0_1, %c0_2] : memref<32x256xbf16, #tpu.memory_space<vmem>>, vector<32x256xbf16>
    %c0_3 = arith.constant 0 : index
    %c0_4 = arith.constant 0 : index
    %3 = vector.load %arg3[%c0_3, %c0_4] : memref<1x256xf32, #tpu.memory_space<vmem>>, vector<1x256xf32>
    %c0_5 = arith.constant 0 : index
    %c0_6 = arith.constant 0 : index
    %4 = vector.load %arg4[%c0_5, %c0_6] : memref<1x256xf32, #tpu.memory_space<vmem>>, vector<1x256xf32>
    %c0_7 = arith.constant 0 : index
    %c0_8 = arith.constant 0 : index
    %5 = vector.load %arg5[%c0_7, %c0_8] : memref<1x256xf32, #tpu.memory_space<vmem>>, vector<1x256xf32>
    %cst = arith.constant dense<0.000000e+00> : vector<8x256xf32>
    %6 = tpu.matmul %1, %2, %cst {dimension_numbers = #tpu.dot_dimension_numbers<[1], [0], [0], [1], [0, 0, 1, 1], [], []>} : vector<8x32xbf16>, vector<32x256xbf16>, vector<8x256xf32> -> vector<8x256xf32>
    %7 = vector.broadcast %3 : vector<1x256xf32> to vector<8x256xf32>
    %8 = arith.addf %6, %7 : vector<8x256xf32>
    %cst_9 = arith.constant dense<0.000000e+00> : vector<8xf32>
    %9 = vector.multi_reduction <add>, %8, %cst_9 [1] : vector<8x256xf32> to vector<8xf32>
    %10 = vector.shape_cast %9 : vector<8xf32> to vector<8x1xf32>
    %cst_10 = arith.constant 2.560000e+02 : f32
    %11 = vector.broadcast %cst_10 : f32 to vector<8x1xf32>
    %12 = arith.divf %10, %11 : vector<8x1xf32>
    %13 = arith.mulf %8, %8 : vector<8x256xf32>
    %cst_11 = arith.constant dense<0.000000e+00> : vector<8xf32>
    %14 = vector.multi_reduction <add>, %13, %cst_11 [1] : vector<8x256xf32> to vector<8xf32>
    %15 = vector.shape_cast %14 : vector<8xf32> to vector<8x1xf32>
    %cst_12 = arith.constant 2.560000e+02 : f32
    %16 = vector.broadcast %cst_12 : f32 to vector<8x1xf32>
    %17 = arith.divf %15, %16 : vector<8x1xf32>
    %18 = arith.mulf %12, %12 : vector<8x1xf32>
    %19 = arith.subf %17, %18 : vector<8x1xf32>
    %cst_13 = arith.constant 0.000000e+00 : f32
    %20 = vector.broadcast %cst_13 : f32 to vector<8x1xf32>
    %21 = arith.maximumf %19, %20 : vector<8x1xf32>
    %22 = vector.broadcast %12 : vector<8x1xf32> to vector<8x256xf32>
    %23 = arith.subf %8, %22 : vector<8x256xf32>
    %cst_14 = arith.constant 9.99999974E-6 : f32
    %24 = vector.broadcast %cst_14 : f32 to vector<8x1xf32>
    %25 = arith.addf %21, %24 : vector<8x1xf32>
    %26 = math.rsqrt %25 : vector<8x1xf32>
    %27 = vector.broadcast %26 : vector<8x1xf32> to vector<8x256xf32>
    %28 = arith.mulf %23, %27 : vector<8x256xf32>
    %29 = vector.broadcast %4 : vector<1x256xf32> to vector<8x256xf32>
    %30 = arith.mulf %28, %29 : vector<8x256xf32>
    %31 = vector.broadcast %5 : vector<1x256xf32> to vector<8x256xf32>
    %32 = arith.addf %30, %31 : vector<8x256xf32>
    %cst_15 = arith.constant 0.000000e+00 : f32
    %33 = vector.broadcast %cst_15 : f32 to vector<8x256xf32>
    %34 = arith.maximumf %32, %33 : vector<8x256xf32>
    %35 = arith.truncf %34 : vector<8x256xf32> to vector<8x256xbf16>
    %c0_16 = arith.constant 0 : index
    %c0_17 = arith.constant 0 : index
    %36 = vector.load %arg6[%c0_16, %c0_17] : memref<256x512xbf16, #tpu.memory_space<vmem>>, vector<256x512xbf16>
    %c0_18 = arith.constant 0 : index
    %c0_19 = arith.constant 0 : index
    %37 = vector.load %arg7[%c0_18, %c0_19] : memref<1x512xf32, #tpu.memory_space<vmem>>, vector<1x512xf32>
    %c0_20 = arith.constant 0 : index
    %c0_21 = arith.constant 0 : index
    %38 = vector.load %arg8[%c0_20, %c0_21] : memref<1x512xf32, #tpu.memory_space<vmem>>, vector<1x512xf32>
    %c0_22 = arith.constant 0 : index
    %c0_23 = arith.constant 0 : index
    %39 = vector.load %arg9[%c0_22, %c0_23] : memref<1x512xf32, #tpu.memory_space<vmem>>, vector<1x512xf32>
    %cst_24 = arith.constant dense<0.000000e+00> : vector<8x512xf32>
    %40 = tpu.matmul %35, %36, %cst_24 {dimension_numbers = #tpu.dot_dimension_numbers<[1], [0], [0], [1], [0, 0, 1, 1], [], []>} : vector<8x256xbf16>, vector<256x512xbf16>, vector<8x512xf32> -> vector<8x512xf32>
    %41 = vector.broadcast %37 : vector<1x512xf32> to vector<8x512xf32>
    %42 = arith.addf %40, %41 : vector<8x512xf32>
    %cst_25 = arith.constant dense<0.000000e+00> : vector<8xf32>
    %43 = vector.multi_reduction <add>, %42, %cst_25 [1] : vector<8x512xf32> to vector<8xf32>
    %44 = vector.shape_cast %43 : vector<8xf32> to vector<8x1xf32>
    %cst_26 = arith.constant 5.120000e+02 : f32
    %45 = vector.broadcast %cst_26 : f32 to vector<8x1xf32>
    %46 = arith.divf %44, %45 : vector<8x1xf32>
    %47 = arith.mulf %42, %42 : vector<8x512xf32>
    %cst_27 = arith.constant dense<0.000000e+00> : vector<8xf32>
    %48 = vector.multi_reduction <add>, %47, %cst_27 [1] : vector<8x512xf32> to vector<8xf32>
    %49 = vector.shape_cast %48 : vector<8xf32> to vector<8x1xf32>
    %cst_28 = arith.constant 5.120000e+02 : f32
    %50 = vector.broadcast %cst_28 : f32 to vector<8x1xf32>
    %51 = arith.divf %49, %50 : vector<8x1xf32>
    %52 = arith.mulf %46, %46 : vector<8x1xf32>
    %53 = arith.subf %51, %52 : vector<8x1xf32>
    %cst_29 = arith.constant 0.000000e+00 : f32
    %54 = vector.broadcast %cst_29 : f32 to vector<8x1xf32>
    %55 = arith.maximumf %53, %54 : vector<8x1xf32>
    %56 = vector.broadcast %46 : vector<8x1xf32> to vector<8x512xf32>
    %57 = arith.subf %42, %56 : vector<8x512xf32>
    %cst_30 = arith.constant 9.99999974E-6 : f32
    %58 = vector.broadcast %cst_30 : f32 to vector<8x1xf32>
    %59 = arith.addf %55, %58 : vector<8x1xf32>
    %60 = math.rsqrt %59 : vector<8x1xf32>
    %61 = vector.broadcast %60 : vector<8x1xf32> to vector<8x512xf32>
    %62 = arith.mulf %57, %61 : vector<8x512xf32>
    %63 = vector.broadcast %38 : vector<1x512xf32> to vector<8x512xf32>
    %64 = arith.mulf %62, %63 : vector<8x512xf32>
    %65 = vector.broadcast %39 : vector<1x512xf32> to vector<8x512xf32>
    %66 = arith.addf %64, %65 : vector<8x512xf32>
    %cst_31 = arith.constant 0.000000e+00 : f32
    %67 = vector.broadcast %cst_31 : f32 to vector<8x512xf32>
    %68 = arith.maximumf %66, %67 : vector<8x512xf32>
    %69 = arith.truncf %68 : vector<8x512xf32> to vector<8x512xbf16>
    %c0_32 = arith.constant 0 : index
    %c0_33 = arith.constant 0 : index
    %70 = vector.load %arg10[%c0_32, %c0_33] : memref<512x1024xbf16, #tpu.memory_space<vmem>>, vector<512x1024xbf16>
    %c0_34 = arith.constant 0 : index
    %c0_35 = arith.constant 0 : index
    %71 = vector.load %arg11[%c0_34, %c0_35] : memref<1x1024xf32, #tpu.memory_space<vmem>>, vector<1x1024xf32>
    %c0_36 = arith.constant 0 : index
    %c0_37 = arith.constant 0 : index
    %72 = vector.load %arg12[%c0_36, %c0_37] : memref<1x1024xf32, #tpu.memory_space<vmem>>, vector<1x1024xf32>
    %c0_38 = arith.constant 0 : index
    %c0_39 = arith.constant 0 : index
    %73 = vector.load %arg13[%c0_38, %c0_39] : memref<1x1024xf32, #tpu.memory_space<vmem>>, vector<1x1024xf32>
    %cst_40 = arith.constant dense<0.000000e+00> : vector<8x1024xf32>
    %74 = tpu.matmul %69, %70, %cst_40 {dimension_numbers = #tpu.dot_dimension_numbers<[1], [0], [0], [1], [0, 0, 1, 1], [], []>} : vector<8x512xbf16>, vector<512x1024xbf16>, vector<8x1024xf32> -> vector<8x1024xf32>
    %75 = vector.broadcast %71 : vector<1x1024xf32> to vector<8x1024xf32>
    %76 = arith.addf %74, %75 : vector<8x1024xf32>
    %cst_41 = arith.constant dense<0.000000e+00> : vector<8xf32>
    %77 = vector.multi_reduction <add>, %76, %cst_41 [1] : vector<8x1024xf32> to vector<8xf32>
    %78 = vector.shape_cast %77 : vector<8xf32> to vector<8x1xf32>
    %cst_42 = arith.constant 1.024000e+03 : f32
    %79 = vector.broadcast %cst_42 : f32 to vector<8x1xf32>
    %80 = arith.divf %78, %79 : vector<8x1xf32>
    %81 = arith.mulf %76, %76 : vector<8x1024xf32>
    %cst_43 = arith.constant dense<0.000000e+00> : vector<8xf32>
    %82 = vector.multi_reduction <add>, %81, %cst_43 [1] : vector<8x1024xf32> to vector<8xf32>
    %83 = vector.shape_cast %82 : vector<8xf32> to vector<8x1xf32>
    %cst_44 = arith.constant 1.024000e+03 : f32
    %84 = vector.broadcast %cst_44 : f32 to vector<8x1xf32>
    %85 = arith.divf %83, %84 : vector<8x1xf32>
    %86 = arith.mulf %80, %80 : vector<8x1xf32>
    %87 = arith.subf %85, %86 : vector<8x1xf32>
    %cst_45 = arith.constant 0.000000e+00 : f32
    %88 = vector.broadcast %cst_45 : f32 to vector<8x1xf32>
    %89 = arith.maximumf %87, %88 : vector<8x1xf32>
    %90 = vector.broadcast %80 : vector<8x1xf32> to vector<8x1024xf32>
    %91 = arith.subf %76, %90 : vector<8x1024xf32>
    %cst_46 = arith.constant 9.99999974E-6 : f32
    %92 = vector.broadcast %cst_46 : f32 to vector<8x1xf32>
    %93 = arith.addf %89, %92 : vector<8x1xf32>
    %94 = math.rsqrt %93 : vector<8x1xf32>
    %95 = vector.broadcast %94 : vector<8x1xf32> to vector<8x1024xf32>
    %96 = arith.mulf %91, %95 : vector<8x1024xf32>
    %97 = vector.broadcast %72 : vector<1x1024xf32> to vector<8x1024xf32>
    %98 = arith.mulf %96, %97 : vector<8x1024xf32>
    %99 = vector.broadcast %73 : vector<1x1024xf32> to vector<8x1024xf32>
    %100 = arith.addf %98, %99 : vector<8x1024xf32>
    %cst_47 = arith.constant 0.000000e+00 : f32
    %101 = vector.broadcast %cst_47 : f32 to vector<8x1024xf32>
    %102 = arith.maximumf %100, %101 : vector<8x1024xf32>
    %103 = arith.truncf %102 : vector<8x1024xf32> to vector<8x1024xbf16>
    %c0_48 = arith.constant 0 : index
    %c0_49 = arith.constant 0 : index
    %104 = vector.load %arg14[%c0_48, %c0_49] : memref<1024x32xbf16, #tpu.memory_space<vmem>>, vector<1024x32xbf16>
    %cst_50 = arith.constant dense<0.000000e+00> : vector<8x32xf32>
    %105 = tpu.matmul %103, %104, %cst_50 {dimension_numbers = #tpu.dot_dimension_numbers<[1], [0], [0], [1], [0, 0, 1, 1], [], []>} : vector<8x1024xbf16>, vector<1024x32xbf16>, vector<8x32xf32> -> vector<8x32xf32>
    %c0_51 = arith.constant 0 : index
    %c0_52 = arith.constant 0 : index
    %106 = vector.load %arg15[%c0_51, %c0_52] : memref<1x32xf32, #tpu.memory_space<vmem>>, vector<1x32xf32>
    %107 = vector.broadcast %106 : vector<1x32xf32> to vector<8x32xf32>
    %108 = arith.addf %105, %107 : vector<8x32xf32>
    %109 = math.tanh %108 : vector<8x32xf32>
    %c0_53 = arith.constant 0 : index
    %c0_54 = arith.constant 0 : index
    %110 = vector.load %arg16[%c0_53, %c0_54] : memref<8x32xf32, #tpu.memory_space<vmem>>, vector<8x32xf32>
    tpu.vector_store %arg16[%c0_53, %c0_54], %109 {strides = array<i32>} : memref<8x32xf32, #tpu.memory_space<vmem>>, vector<8x32xf32>,
    return
  }
  func.func @transform_0(%arg0: i32) -> (i32, i32) {
    %c0_i32 = arith.constant 0 : i32
    %c0_i32_0 = arith.constant 0 : i32
    return %arg0, %c0_i32 : i32, i32
  }
  func.func @transform_1(%arg0: i32) -> (i32, i32) {
    %c0_i32 = arith.constant 0 : i32
    %c0_i32_0 = arith.constant 0 : i32
    %c0_i32_1 = arith.constant 0 : i32
    return %c0_i32, %c0_i32_0 : i32, i32
  }
  func.func @transform_2(%arg0: i32) -> (i32, i32) {
    %c0_i32 = arith.constant 0 : i32
    %c0_i32_0 = arith.constant 0 : i32
    %c0_i32_1 = arith.constant 0 : i32
    return %c0_i32, %c0_i32_0 : i32, i32
  }
  func.func @transform_3(%arg0: i32) -> (i32, i32) {
    %c0_i32 = arith.constant 0 : i32
    %c0_i32_0 = arith.constant 0 : i32
    %c0_i32_1 = arith.constant 0 : i32
    return %c0_i32, %c0_i32_0 : i32, i32
  }
  func.func @transform_4(%arg0: i32) -> (i32, i32) {
    %c0_i32 = arith.constant 0 : i32
    %c0_i32_0 = arith.constant 0 : i32
    %c0_i32_1 = arith.constant 0 : i32
    return %c0_i32, %c0_i32_0 : i32, i32
  }
  func.func @transform_5(%arg0: i32) -> (i32, i32) {
    %c0_i32 = arith.constant 0 : i32
    %c0_i32_0 = arith.constant 0 : i32
    %c0_i32_1 = arith.constant 0 : i32
    return %c0_i32, %c0_i32_0 : i32, i32
  }
  func.func @transform_6(%arg0: i32) -> (i32, i32) {
    %c0_i32 = arith.constant 0 : i32
    %c0_i32_0 = arith.constant 0 : i32
    %c0_i32_1 = arith.constant 0 : i32
    return %c0_i32, %c0_i32_0 : i32, i32
  }
  func.func @transform_7(%arg0: i32) -> (i32, i32) {
    %c0_i32 = arith.constant 0 : i32
    %c0_i32_0 = arith.constant 0 : i32
    %c0_i32_1 = arith.constant 0 : i32
    return %c0_i32, %c0_i32_0 : i32, i32
  }
  func.func @transform_8(%arg0: i32) -> (i32, i32) {
    %c0_i32 = arith.constant 0 : i32
    %c0_i32_0 = arith.constant 0 : i32
    %c0_i32_1 = arith.constant 0 : i32
    return %c0_i32, %c0_i32_0 : i32, i32
  }
  func.func @transform_9(%arg0: i32) -> (i32, i32) {
    %c0_i32 = arith.constant 0 : i32
    %c0_i32_0 = arith.constant 0 : i32
    %c0_i32_1 = arith.constant 0 : i32
    return %c0_i32, %c0_i32_0 : i32, i32
  }
  func.func @transform_10(%arg0: i32) -> (i32, i32) {
    %c0_i32 = arith.constant 0 : i32
    %c0_i32_0 = arith.constant 0 : i32
    %c0_i32_1 = arith.constant 0 : i32
    return %c0_i32, %c0_i32_0 : i32, i32
  }
  func.func @transform_11(%arg0: i32) -> (i32, i32) {
    %c0_i32 = arith.constant 0 : i32
    %c0_i32_0 = arith.constant 0 : i32
    %c0_i32_1 = arith.constant 0 : i32
    return %c0_i32, %c0_i32_0 : i32, i32
  }
  func.func @transform_12(%arg0: i32) -> (i32, i32) {
    %c0_i32 = arith.constant 0 : i32
    %c0_i32_0 = arith.constant 0 : i32
    %c0_i32_1 = arith.constant 0 : i32
    return %c0_i32, %c0_i32_0 : i32, i32
  }
  func.func @transform_13(%arg0: i32) -> (i32, i32) {
    %c0_i32 = arith.constant 0 : i32
    %c0_i32_0 = arith.constant 0 : i32
    %c0_i32_1 = arith.constant 0 : i32
    return %c0_i32, %c0_i32_0 : i32, i32
  }
  func.func @transform_14(%arg0: i32) -> (i32, i32) {
    %c0_i32 = arith.constant 0 : i32
    %c0_i32_0 = arith.constant 0 : i32
    %c0_i32_1 = arith.constant 0 : i32
    return %c0_i32, %c0_i32_0 : i32, i32
  }
  func.func @transform_15(%arg0: i32) -> (i32, i32) {
    %c0_i32 = arith.constant 0 : i32
    %c0_i32_0 = arith.constant 0 : i32
    return %arg0, %c0_i32 : i32, i32
  }
}

</mosaic_0001>

<llo_original>
// kernel: tpu_custom_call.1
$region0: #{tpu_custom_call.1}
  #allocation0 [shape = 'u32[]', space=smem, size = 0x4, offset = 0x4, fixed_abs, tag = 'smem constant byte address 0x4 - core index']
  #allocation1 [shape = 'u32[72,128]{1,0:T(1,128)}', space=vmem, size = 0x9000, scoped, tag = 'internal scratch']
  %s0 = inlined_call_operand.vmem [shape: f32[8,32], index: 0, kind: input, shape index: {}]
  %s1 = inlined_call_operand.vmem [shape: bf16[32,256], index: 1, kind: input, shape index: {}]
  %s2 = inlined_call_operand.vmem [shape: f32[1,256], index: 2, kind: input, shape index: {}]
  %s3 = inlined_call_operand.vmem [shape: f32[1,256], index: 3, kind: input, shape index: {}]
  %s4 = inlined_call_operand.vmem [shape: f32[1,256], index: 4, kind: input, shape index: {}]
  %s5 = inlined_call_operand.vmem [shape: bf16[256,512], index: 5, kind: input, shape index: {}]
  %s6 = inlined_call_operand.vmem [shape: f32[1,512], index: 6, kind: input, shape index: {}]
  %s7 = inlined_call_operand.vmem [shape: f32[1,512], index: 7, kind: input, shape index: {}]
  %s8 = inlined_call_operand.vmem [shape: f32[1,512], index: 8, kind: input, shape index: {}]
  %s9 = inlined_call_operand.hbm [shape: bf16[512,1024], index: 9, kind: input, shape index: {}]
  %s10 = inlined_call_operand.vmem [shape: f32[1,1024], index: 10, kind: input, shape index: {}]
  %s11 = inlined_call_operand.vmem [shape: f32[1,1024], index: 11, kind: input, shape index: {}]
  %s12 = inlined_call_operand.vmem [shape: f32[1,1024], index: 12, kind: input, shape index: {}]
  %s13 = inlined_call_operand.vmem [shape: bf16[1024,32], index: 13, kind: input, shape index: {}]
  %s14 = inlined_call_operand.vmem [shape: f32[1,32], index: 14, kind: input, shape index: {}]
  %s15 = inlined_call_operand.hbm [shape: f32[8,32], index: 15, kind: output, shape index: {}]
  %s16 = sld [smem:[#allocation0]]
  $region74: #{tpu_custom_call.1} parent=0
    _
  %s18 = ssub.s32 1, %s16
  %s19 = scalar_select 0, %s18, %s16
  $region1: #{tpu_custom_call.1} parent=0
    #allocation2 [shape = 'u8[1048576]{0}', space=vmem, size = 0x100000, scoped, tag = 'input window, operand 9, single buffered']
    #allocation3 [shape = 's32[1]{0}', space=sflag, size = 0x4, scoped, tag = 'scoped memory for tpu_custom_call.1']
    #allocation4 [shape = 's32[1]{0}', space=sflag, size = 0x4, scoped, tag = 'scoped memory for tpu_custom_call.1']
    #allocation5 [shape = 'u8[4096]{0}', space=vmem, size = 0x1000, scoped, tag = 'output window, operand 0, single buffered']
    %20 = vsyncpa [#allocation3], 0
    %21 = vsyncpa [#allocation4], 0
    // Predicated region
    $region2: #{tpu_custom_call.1} parent=1 // pred_check
      _
    $region3: #{tpu_custom_call.1} parent=1 // pred_check_branch
      %23 = sbr.rel (0) target = $region5
    $region4: #{tpu_custom_call.1} parent=1 // pred_region
      _
    $region5: #{tpu_custom_call.1} parent=1 // pred_fallthru
      _
    // Predicated region
    $region6: #{tpu_custom_call.1} parent=1 // pred_check
      _
    $region7: #{tpu_custom_call.1} parent=1 // pred_check_branch
      %25 = sbr.rel (0) target = $region9
    $region8: #{tpu_custom_call.1} parent=1 // pred_region
      _
    $region9: #{tpu_custom_call.1} parent=1 // pred_fallthru
      _
    // Predicated region
    $region10: #{tpu_custom_call.1} parent=1 // pred_check
      _
    $region11: #{tpu_custom_call.1} parent=1 // pred_check_branch
      %27 = sbr.rel (0) target = $region13
    $region12: #{tpu_custom_call.1} parent=1 // pred_region
      _
    $region13: #{tpu_custom_call.1} parent=1 // pred_fallthru
      _
    // Predicated region
    $region14: #{tpu_custom_call.1} parent=1 // pred_check
      _
    $region15: #{tpu_custom_call.1} parent=1 // pred_check_branch
      %29 = sbr.rel (0) target = $region17
    $region16: #{tpu_custom_call.1} parent=1 // pred_region
      _
    $region17: #{tpu_custom_call.1} parent=1 // pred_fallthru
      _
    // Predicated region
    $region18: #{tpu_custom_call.1} parent=1 // pred_check
      _
    $region19: #{tpu_custom_call.1} parent=1 // pred_check_branch
      %31 = sbr.rel (0) target = $region21
    $region20: #{tpu_custom_call.1} parent=1 // pred_region
      _
    $region21: #{tpu_custom_call.1} parent=1 // pred_fallthru
      _
    // Predicated region
    $region22: #{tpu_custom_call.1} parent=1 // pred_check
      _
    $region23: #{tpu_custom_call.1} parent=1 // pred_check_branch
      %33 = sbr.rel (0) target = $region25
    $region24: #{tpu_custom_call.1} parent=1 // pred_region
      _
    $region25: #{tpu_custom_call.1} parent=1 // pred_fallthru
      _
    // Predicated region
    $region26: #{tpu_custom_call.1} parent=1 // pred_check
      _
    $region27: #{tpu_custom_call.1} parent=1 // pred_check_branch
      %35 = sbr.rel (0) target = $region29
    $region28: #{tpu_custom_call.1} parent=1 // pred_region
      _
    $region29: #{tpu_custom_call.1} parent=1 // pred_fallthru
      _
    // Predicated region
    $region30: #{tpu_custom_call.1} parent=1 // pred_check
      _
    $region31: #{tpu_custom_call.1} parent=1 // pred_check_branch
      %37 = sbr.rel (0) target = $region33
    $region32: #{tpu_custom_call.1} parent=1 // pred_region
      _
    $region33: #{tpu_custom_call.1} parent=1 // pred_fallthru
      _
    // Predicated region
    $region34: #{tpu_custom_call.1} parent=1 // pred_check
      _
    $region35: #{tpu_custom_call.1} parent=1 // pred_check_branch
      %39 = sbr.rel (0) target = $region37
    $region36: #{tpu_custom_call.1} parent=1 // pred_region
      _
    $region37: #{tpu_custom_call.1} parent=1 // pred_fallthru
      _
    // Predicated region
    $region38: #{tpu_custom_call.1} parent=1 // pred_check
      _
    $region39: #{tpu_custom_call.1} parent=1 // pred_check_branch
      %41 = sbr.rel (0) target = $region41
    $region40: #{tpu_custom_call.1} parent=1 // pred_region
      %43 = vsyncadd [#allocation3], 0
      %s44 = sshll.u32 %s9, 4
      %s45 = int_to_ptr.hbm [resolvable:$true] %s44
      %s46 = sshll.u32 [#allocation2], 4
      %s47 = int_to_ptr.vmem [resolvable:$true] %s46
      %52 = dma.hbm_to_vmem [thread:$0]  %s45, 32768, %s47, [#allocation3], 512, 512, 32
    $region41: #{tpu_custom_call.1} parent=1 // pred_fallthru
      _
    // Predicated region
    $region42: #{tpu_custom_call.1} parent=1 // pred_check
      _
    $region43: #{tpu_custom_call.1} parent=1 // pred_check_branch
      %54 = sbr.rel (0) target = $region45
    $region44: #{tpu_custom_call.1} parent=1 // pred_region
      _
    $region45: #{tpu_custom_call.1} parent=1 // pred_fallthru
      _
    // Predicated region
    $region46: #{tpu_custom_call.1} parent=1 // pred_check
      _
    $region47: #{tpu_custom_call.1} parent=1 // pred_check_branch
      %56 = sbr.rel (0) target = $region49
    $region48: #{tpu_custom_call.1} parent=1 // pred_region
      _
    $region49: #{tpu_custom_call.1} parent=1 // pred_fallthru
      _
    // Predicated region
    $region50: #{tpu_custom_call.1} parent=1 // pred_check
      _
    $region51: #{tpu_custom_call.1} parent=1 // pred_check_branch
      %58 = sbr.rel (0) target = $region53
    $region52: #{tpu_custom_call.1} parent=1 // pred_region
      _
    $region53: #{tpu_custom_call.1} parent=1 // pred_fallthru
      _
    // Predicated region
    $region54: #{tpu_custom_call.1} parent=1 // pred_check
      _
    $region55: #{tpu_custom_call.1} parent=1 // pred_check_branch
      %60 = sbr.rel (0) target = $region57
    $region56: #{tpu_custom_call.1} parent=1 // pred_region
      _
    $region57: #{tpu_custom_call.1} parent=1 // pred_fallthru
      _
    // Predicated region
    $region58: #{tpu_custom_call.1} parent=1 // pred_check
      _
    $region59: #{tpu_custom_call.1} parent=1 // pred_check_branch
      %62 = sbr.rel (0) target = $region61
    $region60: #{tpu_custom_call.1} parent=1 // pred_region
      _
    $region61: #{tpu_custom_call.1} parent=1 // pred_fallthru
      _
    // Predicated region
    $region62: #{tpu_custom_call.1} parent=1 // pred_check
      _
    $region63: #{tpu_custom_call.1} parent=1 // pred_check_branch
      %64 = sbr.rel (0) target = $region65
    $region64: #{tpu_custom_call.1} parent=1 // pred_region
      %66 = dma.done [#allocation3], 32768
    $region65: #{tpu_custom_call.1} parent=1 // pred_fallthru
      _
    %v68 = vld [vmem:[%s0] sm:$0xff]
    %v69 = vpack.c.bf16 %v68, %v68
    %v70 = vld [vmem:[%s1] sm:$0xff]
    %v71 = vld [vmem:[%s1 + $0x8] sm:$0xff]
    %v72 = vld [vmem:[%s1 + $0x10] sm:$0xff]
    %v73 = vld [vmem:[%s1 + $0x18] sm:$0xff]
    %v74 = vld [vmem:[%s2] sm:$0x3]
    %v75 = vld [vmem:[%s3] sm:$0x3]
    %v76 = vld [vmem:[%s4] sm:$0x3]
    %v78 = vperm.slane %v74, 0
    %v79 = vperm.slane %v74, 1
    %v86 = vunpack.c.l.b16 %v70
    %v87 = vunpack.c.h.b16 %v70
    %v88 = vunpack.c.l.b16 %v71
    %v89 = vunpack.c.h.b16 %v71
    %v90 = vunpack.c.l.b16 %v72
    %v91 = vunpack.c.h.b16 %v72
    %v92 = vunpack.c.l.b16 %v73
    %v93 = vunpack.c.h.b16 %v73
    %v94 = vpack.c.b16 %v88, %v86
    %v95 = vpack.c.b16 %v89, %v87
    %v96 = vpack.c.b16 %v92, %v90
    %v97 = vpack.c.b16 %v93, %v91
    %vm102 = vcmask 261120
    %v104 = vsel %vm102, %v69, 0
    %106 = vmatpush.bf16.msra.mxu0 0
    %107 = vmatpush.bf16.msra.mxu0 0
    %108 = vmatpush.bf16.msra.mxu0 0
    %109 = vmatpush.bf16.msra.mxu0 0
    %110 = vmatpush.bf16.msra.mxu0 0
    %111 = vmatpush.bf16.msra.mxu0 0
    %112 = vmatpush.bf16.msra.mxu0 %v96
    %113 = vmatpush.bf16.msra.mxu0 %v94
    %114 = vmatmul.bf16.gmra.mxu0 %v104
    %v115 = vpop.f32.mrf.mxu0
    %v116 = vadd.f32 %v78, %v115
    %v117 = vpop.f32.mrf.mxu0
    %118 = vdwg.mxu0
    %119 = vmatpush.bf16.msra.mxu0 0
    %120 = vmatpush.bf16.msra.mxu0 0
    %121 = vmatpush.bf16.msra.mxu0 0
    %122 = vmatpush.bf16.msra.mxu0 0
    %123 = vmatpush.bf16.msra.mxu0 0
    %124 = vmatpush.bf16.msra.mxu0 0
    %125 = vmatpush.bf16.msra.mxu0 %v97
    %126 = vmatpush.bf16.msra.mxu0 %v95
    %127 = vmatmul.bf16.gmra.mxu0 %v104
    %v128 = vpop.f32.mrf.mxu0
    %v129 = vadd.f32 %v79, %v128
    %v130 = vpop.f32.mrf.mxu0
    %131 = vdwg.mxu0
    %v132 = vadd.f32 %v116, %v129
    %133 = vadd.xlane.f32.xlu0 %v132
    %v134 = vpop.xlane.xlu0 %133
    %v135 = vrcp.pop 256.0
    %v136 = vmul.f32 256.0, %v135
    %v137 = vsub.f32 1.0, %v136
    %v138 = vmul.f32 %v135, %v137
    %v139 = vadd.f32 %v135, %v138
    %vm140 = vweird.f32 %v135
    %v141 = vsel %vm140, %v135, %v139
    %v142 = vmul.f32 %v134, %v141
    %v143 = vmul.f32 %v116, %v116
    %v144 = vmul.f32 %v129, %v129
    %v145 = vadd.f32 %v143, %v144
    %146 = vadd.xlane.f32.xlu0 %v145
    %v147 = vpop.xlane.xlu0 %146
    %v148 = vmul.f32 %v147, %v141
    %v149 = vmul.f32 %v142, %v142
    %v150 = vsub.f32 %v148, %v149
    %v151 = vmax.f32 %v150, 0.0
    %v152 = vsub.f32 %v116, %v142
    %v153 = vsub.f32 %v129, %v142
    %v154 = vadd.f32 %v151, 1e-05
    %v155 = vrsqrt.pop %v154
    %v156 = vmul.f32 %v155, %v154
    %v157 = vmul.f32 %v156, %v155
    %v158 = vmul.f32 0.5, %v157
    %v159 = vsub.f32 1.5, %v158
    %v160 = vmul.f32 %v155, %v159
    %vm161 = vweird.f32 %v154
    %vm162 = vweird.f32 %v155
    %vm163 = vmor %vm161, %vm162
    %v164 = vsel %vm163, %v155, %v160
    %v165 = vmul.f32 %v152, %v164
    %v166 = vmul.f32 %v153, %v164
    %v168 = vperm.slane %v75, 0
    %v169 = vperm.slane %v75, 1
    %v172 = vmul.f32 %v165, %v168
    %v173 = vmul.f32 %v166, %v169
    %v175 = vperm.slane %v76, 0
    %v176 = vperm.slane %v76, 1
    %v179 = vadd.f32 %v172, %v175
    %v180 = vadd.f32 %v173, %v176
    %v181 = vmax.f32 %v179, 0.0
    %v182 = vmax.f32 %v180, 0.0
    %v183 = vpack.c.bf16 %v181, %v181
    %v184 = vpack.c.bf16 %v182, %v182
    %v185 = vld [vmem:[%s5] sm:$0xff]
    %v186 = vld [vmem:[%s5 + $0x8] sm:$0xff]
    %v187 = vld [vmem:[%s5 + $0x10] sm:$0xff]
    %v188 = vld [vmem:[%s5 + $0x18] sm:$0xff]
    %v189 = vld [vmem:[%s5 + $0x20] sm:$0xff]
    %v190 = vld [vmem:[%s5 + $0x28] sm:$0xff]
    %v191 = vld [vmem:[%s5 + $0x30] sm:$0xff]
    %v192 = vld [vmem:[%s5 + $0x38] sm:$0xff]
    %v193 = vld [vmem:[%s5 + $0x40] sm:$0xff]
    %v194 = vld [vmem:[%s5 + $0x48] sm:$0xff]
    %v195 = vld [vmem:[%s5 + $0x50] sm:$0xff]
    %v196 = vld [vmem:[%s5 + $0x58] sm:$0xff]
    %v197 = vld [vmem:[%s5 + $0x60] sm:$0xff]
    %v198 = vld [vmem:[%s5 + $0x68] sm:$0xff]
    %v199 = vld [vmem:[%s5 + $0x70] sm:$0xff]
    %v200 = vld [vmem:[%s5 + $0x78] sm:$0xff]
    %v201 = vld [vmem:[%s5 + $0x80] sm:$0xff]
    %v202 = vld [vmem:[%s5 + $0x88] sm:$0xff]
    %v203 = vld [vmem:[%s5 + $0x90] sm:$0xff]
    %v204 = vld [vmem:[%s5 + $0x98] sm:$0xff]
    %v205 = vld [vmem:[%s5 + $0xa0] sm:$0xff]
    %v206 = vld [vmem:[%s5 + $0xa8] sm:$0xff]
    %v207 = vld [vmem:[%s5 + $0xb0] sm:$0xff]
    %v208 = vld [vmem:[%s5 + $0xb8] sm:$0xff]
    %v209 = vld [vmem:[%s5 + $0xc0] sm:$0xff]
    %v210 = vld [vmem:[%s5 + $0xc8] sm:$0xff]
    %v211 = vld [vmem:[%s5 + $0xd0] sm:$0xff]
    %v212 = vld [vmem:[%s5 + $0xd8] sm:$0xff]
    %v213 = vld [vmem:[%s5 + $0xe0] sm:$0xff]
    %v214 = vld [vmem:[%s5 + $0xe8] sm:$0xff]
    %v215 = vld [vmem:[%s5 + $0xf0] sm:$0xff]
    %v216 = vld [vmem:[%s5 + $0xf8] sm:$0xff]
    %v217 = vld [vmem:[%s5 + $0x100] sm:$0xff]
    %v218 = vld [vmem:[%s5 + $0x108] sm:$0xff]
    %v219 = vld [vmem:[%s5 + $0x110] sm:$0xff]
    %v220 = vld [vmem:[%s5 + $0x118] sm:$0xff]
    %v221 = vld [vmem:[%s5 + $0x120] sm:$0xff]
    %v222 = vld [vmem:[%s5 + $0x128] sm:$0xff]
    %v223 = vld [vmem:[%s5 + $0x130] sm:$0xff]
    %v224 = vld [vmem:[%s5 + $0x138] sm:$0xff]
    %v225 = vld [vmem:[%s5 + $0x140] sm:$0xff]
    %v226 = vld [vmem:[%s5 + $0x148] sm:$0xff]
    %v227 = vld [vmem:[%s5 + $0x150] sm:$0xff]
    %v228 = vld [vmem:[%s5 + $0x158] sm:$0xff]
    %v229 = vld [vmem:[%s5 + $0x160] sm:$0xff]
    %v230 = vld [vmem:[%s5 + $0x168] sm:$0xff]
    %v231 = vld [vmem:[%s5 + $0x170] sm:$0xff]
    %v232 = vld [vmem:[%s5 + $0x178] sm:$0xff]
    %v233 = vld [vmem:[%s5 + $0x180] sm:$0xff]
    %v234 = vld [vmem:[%s5 + $0x188] sm:$0xff]
    %v235 = vld [vmem:[%s5 + $0x190] sm:$0xff]
    %v236 = vld [vmem:[%s5 + $0x198] sm:$0xff]
    %v237 = vld [vmem:[%s5 + $0x1a0] sm:$0xff]
    %v238 = vld [vmem:[%s5 + $0x1a8] sm:$0xff]
    %v239 = vld [vmem:[%s5 + $0x1b0] sm:$0xff]
    %v240 = vld [vmem:[%s5 + $0x1b8] sm:$0xff]
    %v241 = vld [vmem:[%s5 + $0x1c0] sm:$0xff]
    %v242 = vld [vmem:[%s5 + $0x1c8] sm:$0xff]
    %v243 = vld [vmem:[%s5 + $0x1d0] sm:$0xff]
    %v244 = vld [vmem:[%s5 + $0x1d8] sm:$0xff]
    %v245 = vld [vmem:[%s5 + $0x1e0] sm:$0xff]
    %v246 = vld [vmem:[%s5 + $0x1e8] sm:$0xff]
    %v247 = vld [vmem:[%s5 + $0x1f0] sm:$0xff]
    %v248 = vld [vmem:[%s5 + $0x1f8] sm:$0xff]
    %v249 = vld [vmem:[%s6] sm:$0xf]
    %v250 = vld [vmem:[%s7] sm:$0xf]
    %v251 = vld [vmem:[%s8] sm:$0xf]
    %v253 = vperm.slane %v249, 0
    %v254 = vperm.slane %v249, 1
    %v255 = vperm.slane %v249, 2
    %v256 = vperm.slane %v249, 3
    %v325 = vunpack.c.l.b16 %v185
    %v326 = vunpack.c.h.b16 %v185
    %v327 = vunpack.c.l.b16 %v186
    %v328 = vunpack.c.h.b16 %v186
    %v329 = vunpack.c.l.b16 %v187
    %v330 = vunpack.c.h.b16 %v187
    %v331 = vunpack.c.l.b16 %v188
    %v332 = vunpack.c.h.b16 %v188
    %v333 = vunpack.c.l.b16 %v189
    %v334 = vunpack.c.h.b16 %v189
    %v335 = vunpack.c.l.b16 %v190
    %v336 = vunpack.c.h.b16 %v190
    %v337 = vunpack.c.l.b16 %v191
    %v338 = vunpack.c.h.b16 %v191
    %v339 = vunpack.c.l.b16 %v192
    %v340 = vunpack.c.h.b16 %v192
    %v341 = vunpack.c.l.b16 %v193
    %v342 = vunpack.c.h.b16 %v193
    %v343 = vunpack.c.l.b16 %v194
    %v344 = vunpack.c.h.b16 %v194
    %v345 = vunpack.c.l.b16 %v195
    %v346 = vunpack.c.h.b16 %v195
    %v347 = vunpack.c.l.b16 %v196
    %v348 = vunpack.c.h.b16 %v196
    %v349 = vunpack.c.l.b16 %v197
    %v350 = vunpack.c.h.b16 %v197
    %v351 = vunpack.c.l.b16 %v198
    %v352 = vunpack.c.h.b16 %v198
    %v353 = vunpack.c.l.b16 %v199
    %v354 = vunpack.c.h.b16 %v199
    %v355 = vunpack.c.l.b16 %v200
    %v356 = vunpack.c.h.b16 %v200
    %v357 = vunpack.c.l.b16 %v201
    %v358 = vunpack.c.h.b16 %v201
    %v359 = vunpack.c.l.b16 %v202
    %v360 = vunpack.c.h.b16 %v202
    %v361 = vunpack.c.l.b16 %v203
    %v362 = vunpack.c.h.b16 %v203
    %v363 = vunpack.c.l.b16 %v204
    %v364 = vunpack.c.h.b16 %v204
    %v365 = vunpack.c.l.b16 %v205
    %v366 = vunpack.c.h.b16 %v205
    %v367 = vunpack.c.l.b16 %v206
    %v368 = vunpack.c.h.b16 %v206
    %v369 = vunpack.c.l.b16 %v207
    %v370 = vunpack.c.h.b16 %v207
    %v371 = vunpack.c.l.b16 %v208
    %v372 = vunpack.c.h.b16 %v208
    %v373 = vunpack.c.l.b16 %v209
    %v374 = vunpack.c.h.b16 %v209
    %v375 = vunpack.c.l.b16 %v210
    %v376 = vunpack.c.h.b16 %v210
    %v377 = vunpack.c.l.b16 %v211
    %v378 = vunpack.c.h.b16 %v211
    %v379 = vunpack.c.l.b16 %v212
    %v380 = vunpack.c.h.b16 %v212
    %v381 = vunpack.c.l.b16 %v213
    %v382 = vunpack.c.h.b16 %v213
    %v383 = vunpack.c.l.b16 %v214
    %v384 = vunpack.c.h.b16 %v214
    %v385 = vunpack.c.l.b16 %v215
    %v386 = vunpack.c.h.b16 %v215
    %v387 = vunpack.c.l.b16 %v216
    %v388 = vunpack.c.h.b16 %v216
    %v389 = vunpack.c.l.b16 %v217
    %v390 = vunpack.c.h.b16 %v217
    %v391 = vunpack.c.l.b16 %v218
    %v392 = vunpack.c.h.b16 %v218
    %v393 = vunpack.c.l.b16 %v219
    %v394 = vunpack.c.h.b16 %v219
    %v395 = vunpack.c.l.b16 %v220
    %v396 = vunpack.c.h.b16 %v220
    %v397 = vunpack.c.l.b16 %v221
    %v398 = vunpack.c.h.b16 %v221
    %v399 = vunpack.c.l.b16 %v222
    %v400 = vunpack.c.h.b16 %v222
    %v401 = vunpack.c.l.b16 %v223
    %v402 = vunpack.c.h.b16 %v223
    %v403 = vunpack.c.l.b16 %v224
    %v404 = vunpack.c.h.b16 %v224
    %v405 = vunpack.c.l.b16 %v225
    %v406 = vunpack.c.h.b16 %v225
    %v407 = vunpack.c.l.b16 %v226
    %v408 = vunpack.c.h.b16 %v226
    %v409 = vunpack.c.l.b16 %v227
    %v410 = vunpack.c.h.b16 %v227
    %v411 = vunpack.c.l.b16 %v228
    %v412 = vunpack.c.h.b16 %v228
    %v413 = vunpack.c.l.b16 %v229
    %v414 = vunpack.c.h.b16 %v229
    %v415 = vunpack.c.l.b16 %v230
    %v416 = vunpack.c.h.b16 %v230
    %v417 = vunpack.c.l.b16 %v231
    %v418 = vunpack.c.h.b16 %v231
    %v419 = vunpack.c.l.b16 %v232
    %v420 = vunpack.c.h.b16 %v232
    %v421 = vunpack.c.l.b16 %v233
    %v422 = vunpack.c.h.b16 %v233
    %v423 = vunpack.c.l.b16 %v234
    %v424 = vunpack.c.h.b16 %v234
    %v425 = vunpack.c.l.b16 %v235
    %v426 = vunpack.c.h.b16 %v235
    %v427 = vunpack.c.l.b16 %v236
    %v428 = vunpack.c.h.b16 %v236
    %v429 = vunpack.c.l.b16 %v237
    %v430 = vunpack.c.h.b16 %v237
    %v431 = vunpack.c.l.b16 %v238
    %v432 = vunpack.c.h.b16 %v238
    %v433 = vunpack.c.l.b16 %v239
    %v434 = vunpack.c.h.b16 %v239
    %v435 = vunpack.c.l.b16 %v240
    %v436 = vunpack.c.h.b16 %v240
    %v437 = vunpack.c.l.b16 %v241
    %v438 = vunpack.c.h.b16 %v241
    %v439 = vunpack.c.l.b16 %v242
    %v440 = vunpack.c.h.b16 %v242
    %v441 = vunpack.c.l.b16 %v243
    %v442 = vunpack.c.h.b16 %v243
    %v443 = vunpack.c.l.b16 %v244
    %v444 = vunpack.c.h.b16 %v244
    %v445 = vunpack.c.l.b16 %v245
    %v446 = vunpack.c.h.b16 %v245
    %v447 = vunpack.c.l.b16 %v246
    %v448 = vunpack.c.h.b16 %v246
    %v449 = vunpack.c.l.b16 %v247
    %v450 = vunpack.c.h.b16 %v247
    %v451 = vunpack.c.l.b16 %v248
    %v452 = vunpack.c.h.b16 %v248
    %v453 = vpack.c.b16 %v329, %v325
    %v454 = vpack.c.b16 %v330, %v326
    %v455 = vpack.c.b16 %v331, %v327
    %v456 = vpack.c.b16 %v332, %v328
    %v457 = vpack.c.b16 %v337, %v333
    %v458 = vpack.c.b16 %v338, %v334
    %v459 = vpack.c.b16 %v339, %v335
    %v460 = vpack.c.b16 %v340, %v336
    %v461 = vpack.c.b16 %v345, %v341
    %v462 = vpack.c.b16 %v346, %v342
    %v463 = vpack.c.b16 %v347, %v343
    %v464 = vpack.c.b16 %v348, %v344
    %v465 = vpack.c.b16 %v353, %v349
    %v466 = vpack.c.b16 %v354, %v350
    %v467 = vpack.c.b16 %v355, %v351
    %v468 = vpack.c.b16 %v356, %v352
    %v469 = vpack.c.b16 %v361, %v357
    %v470 = vpack.c.b16 %v362, %v358
    %v471 = vpack.c.b16 %v363, %v359
    %v472 = vpack.c.b16 %v364, %v360
    %v473 = vpack.c.b16 %v369, %v365
    %v474 = vpack.c.b16 %v370, %v366
    %v475 = vpack.c.b16 %v371, %v367
    %v476 = vpack.c.b16 %v372, %v368
    %v477 = vpack.c.b16 %v377, %v373
    %v478 = vpack.c.b16 %v378, %v374
    %v479 = vpack.c.b16 %v379, %v375
    %v480 = vpack.c.b16 %v380, %v376
    %v481 = vpack.c.b16 %v385, %v381
    %v482 = vpack.c.b16 %v386, %v382
    %v483 = vpack.c.b16 %v387, %v383
    %v484 = vpack.c.b16 %v388, %v384
    %v485 = vpack.c.b16 %v393, %v389
    %v486 = vpack.c.b16 %v394, %v390
    %v487 = vpack.c.b16 %v395, %v391
    %v488 = vpack.c.b16 %v396, %v392
    %v489 = vpack.c.b16 %v401, %v397
    %v490 = vpack.c.b16 %v402, %v398
    %v491 = vpack.c.b16 %v403, %v399
    %v492 = vpack.c.b16 %v404, %v400
    %v493 = vpack.c.b16 %v409, %v405
    %v494 = vpack.c.b16 %v410, %v406
    %v495 = vpack.c.b16 %v411, %v407
    %v496 = vpack.c.b16 %v412, %v408
    %v497 = vpack.c.b16 %v417, %v413
    %v498 = vpack.c.b16 %v418, %v414
    %v499 = vpack.c.b16 %v419, %v415
    %v500 = vpack.c.b16 %v420, %v416
    %v501 = vpack.c.b16 %v425, %v421
    %v502 = vpack.c.b16 %v426, %v422
    %v503 = vpack.c.b16 %v427, %v423
    %v504 = vpack.c.b16 %v428, %v424
    %v505 = vpack.c.b16 %v433, %v429
    %v506 = vpack.c.b16 %v434, %v430
    %v507 = vpack.c.b16 %v435, %v431
    %v508 = vpack.c.b16 %v436, %v432
    %v509 = vpack.c.b16 %v441, %v437
    %v510 = vpack.c.b16 %v442, %v438
    %v511 = vpack.c.b16 %v443, %v439
    %v512 = vpack.c.b16 %v444, %v440
    %v513 = vpack.c.b16 %v449, %v445
    %v514 = vpack.c.b16 %v450, %v446
    %v515 = vpack.c.b16 %v451, %v447
    %v516 = vpack.c.b16 %v452, %v448
    %581 = vmatpush.bf16.msra.mxu0 %v481
    %582 = vmatpush.bf16.msra.mxu0 %v477
    %583 = vmatpush.bf16.msra.mxu0 %v473
    %584 = vmatpush.bf16.msra.mxu0 %v469
    %585 = vmatpush.bf16.msra.mxu0 %v465
    %586 = vmatpush.bf16.msra.mxu0 %v461
    %587 = vmatpush.bf16.msra.mxu0 %v457
    %588 = vmatpush.bf16.msra.mxu0 %v453
    %589 = vmatmul.bf16.gmra.mxu0 %v183
    %v590 = vpop.f32.mrf.mxu0
    %v591 = vadd.f32 %v253, %v590
    %v592 = vpop.f32.mrf.mxu0
    %593 = vdwg.mxu0
    %594 = vmatpush.bf16.msra.mxu0 %v513
    %595 = vmatpush.bf16.msra.mxu0 %v509
    %596 = vmatpush.bf16.msra.mxu0 %v505
    %597 = vmatpush.bf16.msra.mxu0 %v501
    %598 = vmatpush.bf16.msra.mxu0 %v497
    %599 = vmatpush.bf16.msra.mxu0 %v493
    %600 = vmatpush.bf16.msra.mxu0 %v489
    %601 = vmatpush.bf16.msra.mxu0 %v485
    %602 = vmatmul.bf16.gmra.mxu0 %v184
    %v603 = vpop.f32.mrf.mxu0
    %v604 = vadd.f32 %v591, %v603
    %v605 = vpop.f32.mrf.mxu0
    %606 = vdwg.mxu0
    %607 = vmatpush.bf16.msra.mxu0 %v482
    %608 = vmatpush.bf16.msra.mxu0 %v478
    %609 = vmatpush.bf16.msra.mxu0 %v474
    %610 = vmatpush.bf16.msra.mxu0 %v470
    %611 = vmatpush.bf16.msra.mxu0 %v466
    %612 = vmatpush.bf16.msra.mxu0 %v462
    %613 = vmatpush.bf16.msra.mxu0 %v458
    %614 = vmatpush.bf16.msra.mxu0 %v454
    %615 = vmatmul.bf16.gmra.mxu0 %v183
    %v616 = vpop.f32.mrf.mxu0
    %v617 = vadd.f32 %v254, %v616
    %v618 = vpop.f32.mrf.mxu0
    %619 = vdwg.mxu0
    %620 = vmatpush.bf16.msra.mxu0 %v514
    %621 = vmatpush.bf16.msra.mxu0 %v510
    %622 = vmatpush.bf16.msra.mxu0 %v506
    %623 = vmatpush.bf16.msra.mxu0 %v502
    %624 = vmatpush.bf16.msra.mxu0 %v498
    %625 = vmatpush.bf16.msra.mxu0 %v494
    %626 = vmatpush.bf16.msra.mxu0 %v490
    %627 = vmatpush.bf16.msra.mxu0 %v486
    %628 = vmatmul.bf16.gmra.mxu0 %v184
    %v629 = vpop.f32.mrf.mxu0
    %v630 = vadd.f32 %v617, %v629
    %v631 = vpop.f32.mrf.mxu0
    %632 = vdwg.mxu0
    %633 = vmatpush.bf16.msra.mxu0 %v483
    %634 = vmatpush.bf16.msra.mxu0 %v479
    %635 = vmatpush.bf16.msra.mxu0 %v475
    %636 = vmatpush.bf16.msra.mxu0 %v471
    %637 = vmatpush.bf16.msra.mxu0 %v467
    %638 = vmatpush.bf16.msra.mxu0 %v463
    %639 = vmatpush.bf16.msra.mxu0 %v459
    %640 = vmatpush.bf16.msra.mxu0 %v455
    %641 = vmatmul.bf16.gmra.mxu0 %v183
    %v642 = vpop.f32.mrf.mxu0
    %v643 = vadd.f32 %v255, %v642
    %v644 = vpop.f32.mrf.mxu0
    %645 = vdwg.mxu0
    %646 = vmatpush.bf16.msra.mxu0 %v515
    %647 = vmatpush.bf16.msra.mxu0 %v511
    %648 = vmatpush.bf16.msra.mxu0 %v507
    %649 = vmatpush.bf16.msra.mxu0 %v503
    %650 = vmatpush.bf16.msra.mxu0 %v499
    %651 = vmatpush.bf16.msra.mxu0 %v495
    %652 = vmatpush.bf16.msra.mxu0 %v491
    %653 = vmatpush.bf16.msra.mxu0 %v487
    %654 = vmatmul.bf16.gmra.mxu0 %v184
    %v655 = vpop.f32.mrf.mxu0
    %v656 = vadd.f32 %v643, %v655
    %v657 = vpop.f32.mrf.mxu0
    %658 = vdwg.mxu0
    %659 = vmatpush.bf16.msra.mxu0 %v484
    %660 = vmatpush.bf16.msra.mxu0 %v480
    %661 = vmatpush.bf16.msra.mxu0 %v476
    %662 = vmatpush.bf16.msra.mxu0 %v472
    %663 = vmatpush.bf16.msra.mxu0 %v468
    %664 = vmatpush.bf16.msra.mxu0 %v464
    %665 = vmatpush.bf16.msra.mxu0 %v460
    %666 = vmatpush.bf16.msra.mxu0 %v456
    %667 = vmatmul.bf16.gmra.mxu0 %v183
    %v668 = vpop.f32.mrf.mxu0
    %v669 = vadd.f32 %v256, %v668
    %v670 = vpop.f32.mrf.mxu0
    %671 = vdwg.mxu0
    %672 = vmatpush.bf16.msra.mxu0 %v516
    %673 = vmatpush.bf16.msra.mxu0 %v512
    %674 = vmatpush.bf16.msra.mxu0 %v508
    %675 = vmatpush.bf16.msra.mxu0 %v504
    %676 = vmatpush.bf16.msra.mxu0 %v500
    %677 = vmatpush.bf16.msra.mxu0 %v496
    %678 = vmatpush.bf16.msra.mxu0 %v492
    %679 = vmatpush.bf16.msra.mxu0 %v488
    %680 = vmatmul.bf16.gmra.mxu0 %v184
    %v681 = vpop.f32.mrf.mxu0
    %v682 = vadd.f32 %v669, %v681
    %v683 = vpop.f32.mrf.mxu0
    %684 = vdwg.mxu0
    %v685 = vadd.f32 %v604, %v630
    %v686 = vadd.f32 %v685, %v656
    %v687 = vadd.f32 %v686, %v682
    %688 = vadd.xlane.f32.xlu0 %v687
    %v689 = vpop.xlane.xlu0 %688
    %v690 = vrcp.pop 512.0
    %v691 = vmul.f32 512.0, %v690
    %v692 = vsub.f32 1.0, %v691
    %v693 = vmul.f32 %v690, %v692
    %v694 = vadd.f32 %v690, %v693
    %vm695 = vweird.f32 %v690
    %v696 = vsel %vm695, %v690, %v694
    %v697 = vmul.f32 %v689, %v696
    %v698 = vmul.f32 %v604, %v604
    %v699 = vmul.f32 %v630, %v630
    %v700 = vmul.f32 %v656, %v656
    %v701 = vmul.f32 %v682, %v682
    %v702 = vadd.f32 %v698, %v699
    %v703 = vadd.f32 %v702, %v700
    %v704 = vadd.f32 %v703, %v701
    %705 = vadd.xlane.f32.xlu0 %v704
    %v706 = vpop.xlane.xlu0 %705
    %v707 = vmul.f32 %v706, %v696
    %v708 = vmul.f32 %v697, %v697
    %v709 = vsub.f32 %v707, %v708
    %v710 = vmax.f32 %v709, 0.0
    %v711 = vsub.f32 %v604, %v697
    %v712 = vsub.f32 %v630, %v697
    %v713 = vsub.f32 %v656, %v697
    %v714 = vsub.f32 %v682, %v697
    %v715 = vadd.f32 %v710, 1e-05
    %v716 = vrsqrt.pop %v715
    %v717 = vmul.f32 %v716, %v715
    %v718 = vmul.f32 %v717, %v716
    %v719 = vmul.f32 0.5, %v718
    %v720 = vsub.f32 1.5, %v719
    %v721 = vmul.f32 %v716, %v720
    %vm722 = vweird.f32 %v715
    %vm723 = vweird.f32 %v716
    %vm724 = vmor %vm722, %vm723
    %v725 = vsel %vm724, %v716, %v721
    %v726 = vmul.f32 %v711, %v725
    %v727 = vmul.f32 %v712, %v725
    %v728 = vmul.f32 %v713, %v725
    %v729 = vmul.f32 %v714, %v725
    %v731 = vperm.slane %v250, 0
    %v732 = vperm.slane %v250, 1
    %v733 = vperm.slane %v250, 2
    %v734 = vperm.slane %v250, 3
    %v739 = vmul.f32 %v726, %v731
    %v740 = vmul.f32 %v727, %v732
    %v741 = vmul.f32 %v728, %v733
    %v742 = vmul.f32 %v729, %v734
    %v744 = vperm.slane %v251, 0
    %v745 = vperm.slane %v251, 1
    %v746 = vperm.slane %v251, 2
    %v747 = vperm.slane %v251, 3
    %v752 = vadd.f32 %v739, %v744
    %v753 = vadd.f32 %v740, %v745
    %v754 = vadd.f32 %v741, %v746
    %v755 = vadd.f32 %v742, %v747
    %v756 = vmax.f32 %v752, 0.0
    %v757 = vmax.f32 %v753, 0.0
    %v758 = vmax.f32 %v754, 0.0
    %v759 = vmax.f32 %v755, 0.0
    %v760 = vpack.c.bf16 %v756, %v756
    %v761 = vpack.c.bf16 %v757, %v757
    %v762 = vpack.c.bf16 %v758, %v758
    %v763 = vpack.c.bf16 %v759, %v759
    %v764 = vld [vmem:[#allocation2] sm:$0xff]
    %v765 = vld [vmem:[#allocation2 + $0x8] sm:$0xff]
    %v766 = vld [vmem:[#allocation2 + $0x10] sm:$0xff]
    %v767 = vld [vmem:[#allocation2 + $0x18] sm:$0xff]
    %v768 = vld [vmem:[#allocation2 + $0x20] sm:$0xff]
    %v769 = vld [vmem:[#allocation2 + $0x28] sm:$0xff]
    %v770 = vld [vmem:[#allocation2 + $0x30] sm:$0xff]
    %v771 = vld [vmem:[#allocation2 + $0x38] sm:$0xff]
    %v772 = vld [vmem:[#allocation2 + $0x40] sm:$0xff]
    %v773 = vld [vmem:[#allocation2 + $0x48] sm:$0xff]
    %v774 = vld [vmem:[#allocation2 + $0x50] sm:$0xff]
    %v775 = vld [vmem:[#allocation2 + $0x58] sm:$0xff]
    %v776 = vld [vmem:[#allocation2 + $0x60] sm:$0xff]
    %v777 = vld [vmem:[#allocation2 + $0x68] sm:$0xff]
    %v778 = vld [vmem:[#allocation2 + $0x70] sm:$0xff]
    %v779 = vld [vmem:[#allocation2 + $0x78] sm:$0xff]
    %v780 = vld [vmem:[#allocation2 + $0x80] sm:$0xff]
    %v781 = vld [vmem:[#allocation2 + $0x88] sm:$0xff]
    %v782 = vld [vmem:[#allocation2 + $0x90] sm:$0xff]
    %v783 = vld [vmem:[#allocation2 + $0x98] sm:$0xff]
    %v784 = vld [vmem:[#allocation2 + $0xa0] sm:$0xff]
    %v785 = vld [vmem:[#allocation2 + $0xa8] sm:$0xff]
    %v786 = vld [vmem:[#allocation2 + $0xb0] sm:$0xff]
    %v787 = vld [vmem:[#allocation2 + $0xb8] sm:$0xff]
    %v788 = vld [vmem:[#allocation2 + $0xc0] sm:$0xff]
    %v789 = vld [vmem:[#allocation2 + $0xc8] sm:$0xff]
    %v790 = vld [vmem:[#allocation2 + $0xd0] sm:$0xff]
    %v791 = vld [vmem:[#allocation2 + $0xd8] sm:$0xff]
    %v792 = vld [vmem:[#allocation2 + $0xe0] sm:$0xff]
    %v793 = vld [vmem:[#allocation2 + $0xe8] sm:$0xff]
    %v794 = vld [vmem:[#allocation2 + $0xf0] sm:$0xff]
    %v795 = vld [vmem:[#allocation2 + $0xf8] sm:$0xff]
    %v796 = vld [vmem:[#allocation2 + $0x100] sm:$0xff]
    %v797 = vld [vmem:[#allocation2 + $0x108] sm:$0xff]
    %v798 = vld [vmem:[#allocation2 + $0x110] sm:$0xff]
    %v799 = vld [vmem:[#allocation2 + $0x118] sm:$0xff]
    %v800 = vld [vmem:[#allocation2 + $0x120] sm:$0xff]
    %v801 = vld [vmem:[#allocation2 + $0x128] sm:$0xff]
    %v802 = vld [vmem:[#allocation2 + $0x130] sm:$0xff]
    %v803 = vld [vmem:[#allocation2 + $0x138] sm:$0xff]
    %v804 = vld [vmem:[#allocation2 + $0x140] sm:$0xff]
    %v805 = vld [vmem:[#allocation2 + $0x148] sm:$0xff]
    %v806 = vld [vmem:[#allocation2 + $0x150] sm:$0xff]
    %v807 = vld [vmem:[#allocation2 + $0x158] sm:$0xff]
    %v808 = vld [vmem:[#allocation2 + $0x160] sm:$0xff]
    %v809 = vld [vmem:[#allocation2 + $0x168] sm:$0xff]
    %v810 = vld [vmem:[#allocation2 + $0x170] sm:$0xff]
    %v811 = vld [vmem:[#allocation2 + $0x178] sm:$0xff]
    %v812 = vld [vmem:[#allocation2 + $0x180] sm:$0xff]
    %v813 = vld [vmem:[#allocation2 + $0x188] sm:$0xff]
    %v814 = vld [vmem:[#allocation2 + $0x190] sm:$0xff]
    %v815 = vld [vmem:[#allocation2 + $0x198] sm:$0xff]
    %v816 = vld [vmem:[#allocation2 + $0x1a0] sm:$0xff]
    %v817 = vld [vmem:[#allocation2 + $0x1a8] sm:$0xff]
    %v818 = vld [vmem:[#allocation2 + $0x1b0] sm:$0xff]
    %v819 = vld [vmem:[#allocation2 + $0x1b8] sm:$0xff]
    %v820 = vld [vmem:[#allocation2 + $0x1c0] sm:$0xff]
    %v821 = vld [vmem:[#allocation2 + $0x1c8] sm:$0xff]
    %v822 = vld [vmem:[#allocation2 + $0x1d0] sm:$0xff]
    %v823 = vld [vmem:[#allocation2 + $0x1d8] sm:$0xff]
    %v824 = vld [vmem:[#allocation2 + $0x1e0] sm:$0xff]
    %v825 = vld [vmem:[#allocation2 + $0x1e8] sm:$0xff]
    %v826 = vld [vmem:[#allocation2 + $0x1f0] sm:$0xff]
    %v827 = vld [vmem:[#allocation2 + $0x1f8] sm:$0xff]
    %v828 = vld [vmem:[#allocation2 + $0x200] sm:$0xff]
    %v829 = vld [vmem:[#allocation2 + $0x208] sm:$0xff]
    %v830 = vld [vmem:[#allocation2 + $0x210] sm:$0xff]
    %v831 = vld [vmem:[#allocation2 + $0x218] sm:$0xff]
    %v832 = vld [vmem:[#allocation2 + $0x220] sm:$0xff]
    %v833 = vld [vmem:[#allocation2 + $0x228] sm:$0xff]
    %v834 = vld [vmem:[#allocation2 + $0x230] sm:$0xff]
    %v835 = vld [vmem:[#allocation2 + $0x238] sm:$0xff]
    %v836 = vld [vmem:[#allocation2 + $0x240] sm:$0xff]
    %v837 = vld [vmem:[#allocation2 + $0x248] sm:$0xff]
    %v838 = vld [vmem:[#allocation2 + $0x250] sm:$0xff]
    %v839 = vld [vmem:[#allocation2 + $0x258] sm:$0xff]
    %v840 = vld [vmem:[#allocation2 + $0x260] sm:$0xff]
    %v841 = vld [vmem:[#allocation2 + $0x268] sm:$0xff]
    %v842 = vld [vmem:[#allocation2 + $0x270] sm:$0xff]
    %v843 = vld [vmem:[#allocation2 + $0x278] sm:$0xff]
    %v844 = vld [vmem:[#allocation2 + $0x280] sm:$0xff]
    %v845 = vld [vmem:[#allocation2 + $0x288] sm:$0xff]
    %v846 = vld [vmem:[#allocation2 + $0x290] sm:$0xff]
    %v847 = vld [vmem:[#allocation2 + $0x298] sm:$0xff]
    %v848 = vld [vmem:[#allocation2 + $0x2a0] sm:$0xff]
    %v849 = vld [vmem:[#allocation2 + $0x2a8] sm:$0xff]
    %v850 = vld [vmem:[#allocation2 + $0x2b0] sm:$0xff]
    %v851 = vld [vmem:[#allocation2 + $0x2b8] sm:$0xff]
    %v852 = vld [vmem:[#allocation2 + $0x2c0] sm:$0xff]
    %v853 = vld [vmem:[#allocation2 + $0x2c8] sm:$0xff]
    %v854 = vld [vmem:[#allocation2 + $0x2d0] sm:$0xff]
    %v855 = vld [vmem:[#allocation2 + $0x2d8] sm:$0xff]
    %v856 = vld [vmem:[#allocation2 + $0x2e0] sm:$0xff]
    %v857 = vld [vmem:[#allocation2 + $0x2e8] sm:$0xff]
    %v858 = vld [vmem:[#allocation2 + $0x2f0] sm:$0xff]
    %v859 = vld [vmem:[#allocation2 + $0x2f8] sm:$0xff]
    %v860 = vld [vmem:[#allocation2 + $0x300] sm:$0xff]
    %v861 = vld [vmem:[#allocation2 + $0x308] sm:$0xff]
    %v862 = vld [vmem:[#allocation2 + $0x310] sm:$0xff]
    %v863 = vld [vmem:[#allocation2 + $0x318] sm:$0xff]
    %v864 = vld [vmem:[#allocation2 + $0x320] sm:$0xff]
    %v865 = vld [vmem:[#allocation2 + $0x328] sm:$0xff]
    %v866 = vld [vmem:[#allocation2 + $0x330] sm:$0xff]
    %v867 = vld [vmem:[#allocation2 + $0x338] sm:$0xff]
    %v868 = vld [vmem:[#allocation2 + $0x340] sm:$0xff]
    %v869 = vld [vmem:[#allocation2 + $0x348] sm:$0xff]
    %v870 = vld [vmem:[#allocation2 + $0x350] sm:$0xff]
    %v871 = vld [vmem:[#allocation2 + $0x358] sm:$0xff]
    %v872 = vld [vmem:[#allocation2 + $0x360] sm:$0xff]
    %v873 = vld [vmem:[#allocation2 + $0x368] sm:$0xff]
    %v874 = vld [vmem:[#allocation2 + $0x370] sm:$0xff]
    %v875 = vld [vmem:[#allocation2 + $0x378] sm:$0xff]
    %v876 = vld [vmem:[#allocation2 + $0x380] sm:$0xff]
    %v877 = vld [vmem:[#allocation2 + $0x388] sm:$0xff]
    %v878 = vld [vmem:[#allocation2 + $0x390] sm:$0xff]
    %v879 = vld [vmem:[#allocation2 + $0x398] sm:$0xff]
    %v880 = vld [vmem:[#allocation2 + $0x3a0] sm:$0xff]
    %v881 = vld [vmem:[#allocation2 + $0x3a8] sm:$0xff]
    %v882 = vld [vmem:[#allocation2 + $0x3b0] sm:$0xff]
    %v883 = vld [vmem:[#allocation2 + $0x3b8] sm:$0xff]
    %v884 = vld [vmem:[#allocation2 + $0x3c0] sm:$0xff]
    %v885 = vld [vmem:[#allocation2 + $0x3c8] sm:$0xff]
    %v886 = vld [vmem:[#allocation2 + $0x3d0] sm:$0xff]
    %v887 = vld [vmem:[#allocation2 + $0x3d8] sm:$0xff]
    %v888 = vld [vmem:[#allocation2 + $0x3e0] sm:$0xff]
    %v889 = vld [vmem:[#allocation2 + $0x3e8] sm:$0xff]
    %v890 = vld [vmem:[#allocation2 + $0x3f0] sm:$0xff]
    %v891 = vld [vmem:[#allocation2 + $0x3f8] sm:$0xff]
    %v892 = vld [vmem:[#allocation2 + $0x400] sm:$0xff]
    %v893 = vld [vmem:[#allocation2 + $0x408] sm:$0xff]
    %v894 = vld [vmem:[#allocation2 + $0x410] sm:$0xff]
    %v895 = vld [vmem:[#allocation2 + $0x418] sm:$0xff]
    %v896 = vld [vmem:[#allocation2 + $0x420] sm:$0xff]
    %v897 = vld [vmem:[#allocation2 + $0x428] sm:$0xff]
    %v898 = vld [vmem:[#allocation2 + $0x430] sm:$0xff]
    %v899 = vld [vmem:[#allocation2 + $0x438] sm:$0xff]
    %v900 = vld [vmem:[#allocation2 + $0x440] sm:$0xff]
    %v901 = vld [vmem:[#allocation2 + $0x448] sm:$0xff]
    %v902 = vld [vmem:[#allocation2 + $0x450] sm:$0xff]
    %v903 = vld [vmem:[#allocation2 + $0x458] sm:$0xff]
    %v904 = vld [vmem:[#allocation2 + $0x460] sm:$0xff]
    %v905 = vld [vmem:[#allocation2 + $0x468] sm:$0xff]
    %v906 = vld [vmem:[#allocation2 + $0x470] sm:$0xff]
    %v907 = vld [vmem:[#allocation2 + $0x478] sm:$0xff]
    %v908 = vld [vmem:[#allocation2 + $0x480] sm:$0xff]
    %v909 = vld [vmem:[#allocation2 + $0x488] sm:$0xff]
    %v910 = vld [vmem:[#allocation2 + $0x490] sm:$0xff]
    %v911 = vld [vmem:[#allocation2 + $0x498] sm:$0xff]
    %v912 = vld [vmem:[#allocation2 + $0x4a0] sm:$0xff]
    %v913 = vld [vmem:[#allocation2 + $0x4a8] sm:$0xff]
    %v914 = vld [vmem:[#allocation2 + $0x4b0] sm:$0xff]
    %v915 = vld [vmem:[#allocation2 + $0x4b8] sm:$0xff]
    %v916 = vld [vmem:[#allocation2 + $0x4c0] sm:$0xff]
    %v917 = vld [vmem:[#allocation2 + $0x4c8] sm:$0xff]
    %v918 = vld [vmem:[#allocation2 + $0x4d0] sm:$0xff]
    %v919 = vld [vmem:[#allocation2 + $0x4d8] sm:$0xff]
    %v920 = vld [vmem:[#allocation2 + $0x4e0] sm:$0xff]
    %v921 = vld [vmem:[#allocation2 + $0x4e8] sm:$0xff]
    %v922 = vld [vmem:[#allocation2 + $0x4f0] sm:$0xff]
    %v923 = vld [vmem:[#allocation2 + $0x4f8] sm:$0xff]
    %v924 = vld [vmem:[#allocation2 + $0x500] sm:$0xff]
    %v925 = vld [vmem:[#allocation2 + $0x508] sm:$0xff]
    %v926 = vld [vmem:[#allocation2 + $0x510] sm:$0xff]
    %v927 = vld [vmem:[#allocation2 + $0x518] sm:$0xff]
    %v928 = vld [vmem:[#allocation2 + $0x520] sm:$0xff]
    %v929 = vld [vmem:[#allocation2 + $0x528] sm:$0xff]
    %v930 = vld [vmem:[#allocation2 + $0x530] sm:$0xff]
    %v931 = vld [vmem:[#allocation2 + $0x538] sm:$0xff]
    %v932 = vld [vmem:[#allocation2 + $0x540] sm:$0xff]
    %v933 = vld [vmem:[#allocation2 + $0x548] sm:$0xff]
    %v934 = vld [vmem:[#allocation2 + $0x550] sm:$0xff]
    %v935 = vld [vmem:[#allocation2 + $0x558] sm:$0xff]
    %v936 = vld [vmem:[#allocation2 + $0x560] sm:$0xff]
    %v937 = vld [vmem:[#allocation2 + $0x568] sm:$0xff]
    %v938 = vld [vmem:[#allocation2 + $0x570] sm:$0xff]
    %v939 = vld [vmem:[#allocation2 + $0x578] sm:$0xff]
    %v940 = vld [vmem:[#allocation2 + $0x580] sm:$0xff]
    %v941 = vld [vmem:[#allocation2 + $0x588] sm:$0xff]
    %v942 = vld [vmem:[#allocation2 + $0x590] sm:$0xff]
    %v943 = vld [vmem:[#allocation2 + $0x598] sm:$0xff]
    %v944 = vld [vmem:[#allocation2 + $0x5a0] sm:$0xff]
    %v945 = vld [vmem:[#allocation2 + $0x5a8] sm:$0xff]
    %v946 = vld [vmem:[#allocation2 + $0x5b0] sm:$0xff]
    %v947 = vld [vmem:[#allocation2 + $0x5b8] sm:$0xff]
    %v948 = vld [vmem:[#allocation2 + $0x5c0] sm:$0xff]
    %v949 = vld [vmem:[#allocation2 + $0x5c8] sm:$0xff]
    %v950 = vld [vmem:[#allocation2 + $0x5d0] sm:$0xff]
    %v951 = vld [vmem:[#allocation2 + $0x5d8] sm:$0xff]
    %v952 = vld [vmem:[#allocation2 + $0x5e0] sm:$0xff]
    %v953 = vld [vmem:[#allocation2 + $0x5e8] sm:$0xff]
    %v954 = vld [vmem:[#allocation2 + $0x5f0] sm:$0xff]
    %v955 = vld [vmem:[#allocation2 + $0x5f8] sm:$0xff]
    %v956 = vld [vmem:[#allocation2 + $0x600] sm:$0xff]
    %v957 = vld [vmem:[#allocation2 + $0x608] sm:$0xff]
    %v958 = vld [vmem:[#allocation2 + $0x610] sm:$0xff]
    %v959 = vld [vmem:[#allocation2 + $0x618] sm:$0xff]
    %v960 = vld [vmem:[#allocation2 + $0x620] sm:$0xff]
    %v961 = vld [vmem:[#allocation2 + $0x628] sm:$0xff]
    %v962 = vld [vmem:[#allocation2 + $0x630] sm:$0xff]
    %v963 = vld [vmem:[#allocation2 + $0x638] sm:$0xff]
    %v964 = vld [vmem:[#allocation2 + $0x640] sm:$0xff]
    %v965 = vld [vmem:[#allocation2 + $0x648] sm:$0xff]
    %v966 = vld [vmem:[#allocation2 + $0x650] sm:$0xff]
    %v967 = vld [vmem:[#allocation2 + $0x658] sm:$0xff]
    %v968 = vld [vmem:[#allocation2 + $0x660] sm:$0xff]
    %v969 = vld [vmem:[#allocation2 + $0x668] sm:$0xff]
    %v970 = vld [vmem:[#allocation2 + $0x670] sm:$0xff]
    %v971 = vld [vmem:[#allocation2 + $0x678] sm:$0xff]
    %v972 = vld [vmem:[#allocation2 + $0x680] sm:$0xff]
    %v973 = vld [vmem:[#allocation2 + $0x688] sm:$0xff]
    %v974 = vld [vmem:[#allocation2 + $0x690] sm:$0xff]
    %v975 = vld [vmem:[#allocation2 + $0x698] sm:$0xff]
    %v976 = vld [vmem:[#allocation2 + $0x6a0] sm:$0xff]
    %v977 = vld [vmem:[#allocation2 + $0x6a8] sm:$0xff]
    %v978 = vld [vmem:[#allocation2 + $0x6b0] sm:$0xff]
    %v979 = vld [vmem:[#allocation2 + $0x6b8] sm:$0xff]
    %v980 = vld [vmem:[#allocation2 + $0x6c0] sm:$0xff]
    %v981 = vld [vmem:[#allocation2 + $0x6c8] sm:$0xff]
    %v982 = vld [vmem:[#allocation2 + $0x6d0] sm:$0xff]
    %v983 = vld [vmem:[#allocation2 + $0x6d8] sm:$0xff]
    %v984 = vld [vmem:[#allocation2 + $0x6e0] sm:$0xff]
    %v985 = vld [vmem:[#allocation2 + $0x6e8] sm:$0xff]
    %v986 = vld [vmem:[#allocation2 + $0x6f0] sm:$0xff]
    %v987 = vld [vmem:[#allocation2 + $0x6f8] sm:$0xff]
    %v988 = vld [vmem:[#allocation2 + $0x700] sm:$0xff]
    %v989 = vld [vmem:[#allocation2 + $0x708] sm:$0xff]
    %v990 = vld [vmem:[#allocation2 + $0x710] sm:$0xff]
    %v991 = vld [vmem:[#allocation2 + $0x718] sm:$0xff]
    %v992 = vld [vmem:[#allocation2 + $0x720] sm:$0xff]
    %v993 = vld [vmem:[#allocation2 + $0x728] sm:$0xff]
    %v994 = vld [vmem:[#allocation2 + $0x730] sm:$0xff]
    %v995 = vld [vmem:[#allocation2 + $0x738] sm:$0xff]
    %v996 = vld [vmem:[#allocation2 + $0x740] sm:$0xff]
    %v997 = vld [vmem:[#allocation2 + $0x748] sm:$0xff]
    %v998 = vld [vmem:[#allocation2 + $0x750] sm:$0xff]
    %v999 = vld [vmem:[#allocation2 + $0x758] sm:$0xff]
    %v1000 = vld [vmem:[#allocation2 + $0x760] sm:$0xff]
    %v1001 = vld [vmem:[#allocation2 + $0x768] sm:$0xff]
    %v1002 = vld [vmem:[#allocation2 + $0x770] sm:$0xff]
    %v1003 = vld [vmem:[#allocation2 + $0x778] sm:$0xff]
    %v1004 = vld [vmem:[#allocation2 + $0x780] sm:$0xff]
    %v1005 = vld [vmem:[#allocation2 + $0x788] sm:$0xff]
    %v1006 = vld [vmem:[#allocation2 + $0x790] sm:$0xff]
    %v1007 = vld [vmem:[#allocation2 + $0x798] sm:$0xff]
    %v1008 = vld [vmem:[#allocation2 + $0x7a0] sm:$0xff]
    %v1009 = vld [vmem:[#allocation2 + $0x7a8] sm:$0xff]
    %v1010 = vld [vmem:[#allocation2 + $0x7b0] sm:$0xff]
    %v1011 = vld [vmem:[#allocation2 + $0x7b8] sm:$0xff]
    %v1012 = vld [vmem:[#allocation2 + $0x7c0] sm:$0xff]
    %v1013 = vld [vmem:[#allocation2 + $0x7c8] sm:$0xff]
    %v1014 = vld [vmem:[#allocation2 + $0x7d0] sm:$0xff]
    %v1015 = vld [vmem:[#allocation2 + $0x7d8] sm:$0xff]
    %v1016 = vld [vmem:[#allocation2 + $0x7e0] sm:$0xff]
    %v1017 = vld [vmem:[#allocation2 + $0x7e8] sm:$0xff]
    %v1018 = vld [vmem:[#allocation2 + $0x7f0] sm:$0xff]
    %v1019 = vld [vmem:[#allocation2 + $0x7f8] sm:$0xff]
    %v1020 = vld [vmem:[%s10] sm:$0xff]
    %v1021 = vld [vmem:[%s11] sm:$0xff]
    %v1022 = vld [vmem:[%s12] sm:$0xff]
    %v1024 = vperm.slane %v1020, 0
    %v1025 = vperm.slane %v1020, 1
    %v1026 = vperm.slane %v1020, 2
    %v1027 = vperm.slane %v1020, 3
    %v1028 = vperm.slane %v1020, 4
    %v1029 = vperm.slane %v1020, 5
    %v1030 = vperm.slane %v1020, 6
    %v1031 = vperm.slane %v1020, 7
    %v1296 = vunpack.c.l.b16 %v764
    %v1297 = vunpack.c.h.b16 %v764
    %v1298 = vunpack.c.l.b16 %v765
    %v1299 = vunpack.c.h.b16 %v765
    %v1300 = vunpack.c.l.b16 %v766
    %v1301 = vunpack.c.h.b16 %v766
    %v1302 = vunpack.c.l.b16 %v767
    %v1303 = vunpack.c.h.b16 %v767
    %v1304 = vunpack.c.l.b16 %v768
    %v1305 = vunpack.c.h.b16 %v768
    %v1306 = vunpack.c.l.b16 %v769
    %v1307 = vunpack.c.h.b16 %v769
    %v1308 = vunpack.c.l.b16 %v770
    %v1309 = vunpack.c.h.b16 %v770
    %v1310 = vunpack.c.l.b16 %v771
    %v1311 = vunpack.c.h.b16 %v771
    %v1312 = vunpack.c.l.b16 %v772
    %v1313 = vunpack.c.h.b16 %v772
    %v1314 = vunpack.c.l.b16 %v773
    %v1315 = vunpack.c.h.b16 %v773
    %v1316 = vunpack.c.l.b16 %v774
    %v1317 = vunpack.c.h.b16 %v774
    %v1318 = vunpack.c.l.b16 %v775
    %v1319 = vunpack.c.h.b16 %v775
    %v1320 = vunpack.c.l.b16 %v776
    %v1321 = vunpack.c.h.b16 %v776
    %v1322 = vunpack.c.l.b16 %v777
    %v1323 = vunpack.c.h.b16 %v777
    %v1324 = vunpack.c.l.b16 %v778
    %v1325 = vunpack.c.h.b16 %v778
    %v1326 = vunpack.c.l.b16 %v779
    %v1327 = vunpack.c.h.b16 %v779
    %v1328 = vunpack.c.l.b16 %v780
    %v1329 = vunpack.c.h.b16 %v780
    %v1330 = vunpack.c.l.b16 %v781
    %v1331 = vunpack.c.h.b16 %v781
    %v1332 = vunpack.c.l.b16 %v782
    %v1333 = vunpack.c.h.b16 %v782
    %v1334 = vunpack.c.l.b16 %v783
    %v1335 = vunpack.c.h.b16 %v783
    %v1336 = vunpack.c.l.b16 %v784
    %v1337 = vunpack.c.h.b16 %v784
    %v1338 = vunpack.c.l.b16 %v785
    %v1339 = vunpack.c.h.b16 %v785
    %v1340 = vunpack.c.l.b16 %v786
    %v1341 = vunpack.c.h.b16 %v786
    %v1342 = vunpack.c.l.b16 %v787
    %v1343 = vunpack.c.h.b16 %v787
    %v1344 = vunpack.c.l.b16 %v788
    %v1345 = vunpack.c.h.b16 %v788
    %v1346 = vunpack.c.l.b16 %v789
    %v1347 = vunpack.c.h.b16 %v789
    %v1348 = vunpack.c.l.b16 %v790
    %v1349 = vunpack.c.h.b16 %v790
    %v1350 = vunpack.c.l.b16 %v791
    %v1351 = vunpack.c.h.b16 %v791
    %v1352 = vunpack.c.l.b16 %v792
    %v1353 = vunpack.c.h.b16 %v792
    %v1354 = vunpack.c.l.b16 %v793
    %v1355 = vunpack.c.h.b16 %v793
    %v1356 = vunpack.c.l.b16 %v794
    %v1357 = vunpack.c.h.b16 %v794
    %v1358 = vunpack.c.l.b16 %v795
    %v1359 = vunpack.c.h.b16 %v795
    %v1360 = vunpack.c.l.b16 %v796
    %v1361 = vunpack.c.h.b16 %v796
    %v1362 = vunpack.c.l.b16 %v797
    %v1363 = vunpack.c.h.b16 %v797
    %v1364 = vunpack.c.l.b16 %v798
    %v1365 = vunpack.c.h.b16 %v798
    %v1366 = vunpack.c.l.b16 %v799
    %v1367 = vunpack.c.h.b16 %v799
    %v1368 = vunpack.c.l.b16 %v800
    %v1369 = vunpack.c.h.b16 %v800
    %v1370 = vunpack.c.l.b16 %v801
    %v1371 = vunpack.c.h.b16 %v801
    %v1372 = vunpack.c.l.b16 %v802
    %v1373 = vunpack.c.h.b16 %v802
    %v1374 = vunpack.c.l.b16 %v803
    %v1375 = vunpack.c.h.b16 %v803
    %v1376 = vunpack.c.l.b16 %v804
    %v1377 = vunpack.c.h.b16 %v804
    %v1378 = vunpack.c.l.b16 %v805
    %v1379 = vunpack.c.h.b16 %v805
    %v1380 = vunpack.c.l.b16 %v806
    %v1381 = vunpack.c.h.b16 %v806
    %v1382 = vunpack.c.l.b16 %v807
    %v1383 = vunpack.c.h.b16 %v807
    %v1384 = vunpack.c.l.b16 %v808
    %v1385 = vunpack.c.h.b16 %v808
    %v1386 = vunpack.c.l.b16 %v809
    %v1387 = vunpack.c.h.b16 %v809
    %v1388 = vunpack.c.l.b16 %v810
    %v1389 = vunpack.c.h.b16 %v810
    %v1390 = vunpack.c.l.b16 %v811
    %v1391 = vunpack.c.h.b16 %v811
    %v1392 = vunpack.c.l.b16 %v812
    %v1393 = vunpack.c.h.b16 %v812
    %v1394 = vunpack.c.l.b16 %v813
    %v1395 = vunpack.c.h.b16 %v813
    %v1396 = vunpack.c.l.b16 %v814
    %v1397 = vunpack.c.h.b16 %v814
    %v1398 = vunpack.c.l.b16 %v815
    %v1399 = vunpack.c.h.b16 %v815
    %v1400 = vunpack.c.l.b16 %v816
    %v1401 = vunpack.c.h.b16 %v816
    %v1402 = vunpack.c.l.b16 %v817
    %v1403 = vunpack.c.h.b16 %v817
    %v1404 = vunpack.c.l.b16 %v818
    %v1405 = vunpack.c.h.b16 %v818
    %v1406 = vunpack.c.l.b16 %v819
    %v1407 = vunpack.c.h.b16 %v819
    %v1408 = vunpack.c.l.b16 %v820
    %v1409 = vunpack.c.h.b16 %v820
    %v1410 = vunpack.c.l.b16 %v821
    %v1411 = vunpack.c.h.b16 %v821
    %v1412 = vunpack.c.l.b16 %v822
    %v1413 = vunpack.c.h.b16 %v822
    %v1414 = vunpack.c.l.b16 %v823
    %v1415 = vunpack.c.h.b16 %v823
    %v1416 = vunpack.c.l.b16 %v824
    %v1417 = vunpack.c.h.b16 %v824
    %v1418 = vunpack.c.l.b16 %v825
    %v1419 = vunpack.c.h.b16 %v825
    %v1420 = vunpack.c.l.b16 %v826
    %v1421 = vunpack.c.h.b16 %v826
    %v1422 = vunpack.c.l.b16 %v827
    %v1423 = vunpack.c.h.b16 %v827
    %v1424 = vunpack.c.l.b16 %v828
    %v1425 = vunpack.c.h.b16 %v828
    %v1426 = vunpack.c.l.b16 %v829
    %v1427 = vunpack.c.h.b16 %v829
    %v1428 = vunpack.c.l.b16 %v830
    %v1429 = vunpack.c.h.b16 %v830
    %v1430 = vunpack.c.l.b16 %v831
    %v1431 = vunpack.c.h.b16 %v831
    %v1432 = vunpack.c.l.b16 %v832
    %v1433 = vunpack.c.h.b16 %v832
    %v1434 = vunpack.c.l.b16 %v833
    %v1435 = vunpack.c.h.b16 %v833
    %v1436 = vunpack.c.l.b16 %v834
    %v1437 = vunpack.c.h.b16 %v834
    %v1438 = vunpack.c.l.b16 %v835
    %v1439 = vunpack.c.h.b16 %v835
    %v1440 = vunpack.c.l.b16 %v836
    %v1441 = vunpack.c.h.b16 %v836
    %v1442 = vunpack.c.l.b16 %v837
    %v1443 = vunpack.c.h.b16 %v837
    %v1444 = vunpack.c.l.b16 %v838
    %v1445 = vunpack.c.h.b16 %v838
    %v1446 = vunpack.c.l.b16 %v839
    %v1447 = vunpack.c.h.b16 %v839
    %v1448 = vunpack.c.l.b16 %v840
    %v1449 = vunpack.c.h.b16 %v840
    %v1450 = vunpack.c.l.b16 %v841
    %v1451 = vunpack.c.h.b16 %v841
    %v1452 = vunpack.c.l.b16 %v842
    %v1453 = vunpack.c.h.b16 %v842
    %v1454 = vunpack.c.l.b16 %v843
    %v1455 = vunpack.c.h.b16 %v843
    %v1456 = vunpack.c.l.b16 %v844
    %v1457 = vunpack.c.h.b16 %v844
    %v1458 = vunpack.c.l.b16 %v845
    %v1459 = vunpack.c.h.b16 %v845
    %v1460 = vunpack.c.l.b16 %v846
    %v1461 = vunpack.c.h.b16 %v846
    %v1462 = vunpack.c.l.b16 %v847
    %v1463 = vunpack.c.h.b16 %v847
    %v1464 = vunpack.c.l.b16 %v848
    %v1465 = vunpack.c.h.b16 %v848
    %v1466 = vunpack.c.l.b16 %v849
    %v1467 = vunpack.c.h.b16 %v849
    %v1468 = vunpack.c.l.b16 %v850
    %v1469 = vunpack.c.h.b16 %v850
    %v1470 = vunpack.c.l.b16 %v851
    %v1471 = vunpack.c.h.b16 %v851
    %v1472 = vunpack.c.l.b16 %v852
    %v1473 = vunpack.c.h.b16 %v852
    %v1474 = vunpack.c.l.b16 %v853
    %v1475 = vunpack.c.h.b16 %v853
    %v1476 = vunpack.c.l.b16 %v854
    %v1477 = vunpack.c.h.b16 %v854
    %v1478 = vunpack.c.l.b16 %v855
    %v1479 = vunpack.c.h.b16 %v855
    %v1480 = vunpack.c.l.b16 %v856
    %v1481 = vunpack.c.h.b16 %v856
    %v1482 = vunpack.c.l.b16 %v857
    %v1483 = vunpack.c.h.b16 %v857
    %v1484 = vunpack.c.l.b16 %v858
    %v1485 = vunpack.c.h.b16 %v858
    %v1486 = vunpack.c.l.b16 %v859
    %v1487 = vunpack.c.h.b16 %v859
    %v1488 = vunpack.c.l.b16 %v860
    %v1489 = vunpack.c.h.b16 %v860
    %v1490 = vunpack.c.l.b16 %v861
    %v1491 = vunpack.c.h.b16 %v861
    %v1492 = vunpack.c.l.b16 %v862
    %v1493 = vunpack.c.h.b16 %v862
    %v1494 = vunpack.c.l.b16 %v863
    %v1495 = vunpack.c.h.b16 %v863
    %v1496 = vunpack.c.l.b16 %v864
    %v1497 = vunpack.c.h.b16 %v864
    %v1498 = vunpack.c.l.b16 %v865
    %v1499 = vunpack.c.h.b16 %v865
    %v1500 = vunpack.c.l.b16 %v866
    %v1501 = vunpack.c.h.b16 %v866
    %v1502 = vunpack.c.l.b16 %v867
    %v1503 = vunpack.c.h.b16 %v867
    %v1504 = vunpack.c.l.b16 %v868
    %v1505 = vunpack.c.h.b16 %v868
    %v1506 = vunpack.c.l.b16 %v869
    %v1507 = vunpack.c.h.b16 %v869
    %v1508 = vunpack.c.l.b16 %v870
    %v1509 = vunpack.c.h.b16 %v870
    %v1510 = vunpack.c.l.b16 %v871
    %v1511 = vunpack.c.h.b16 %v871
    %v1512 = vunpack.c.l.b16 %v872
    %v1513 = vunpack.c.h.b16 %v872
    %v1514 = vunpack.c.l.b16 %v873
    %v1515 = vunpack.c.h.b16 %v873
    %v1516 = vunpack.c.l.b16 %v874
    %v1517 = vunpack.c.h.b16 %v874
    %v1518 = vunpack.c.l.b16 %v875
    %v1519 = vunpack.c.h.b16 %v875
    %v1520 = vunpack.c.l.b16 %v876
    %v1521 = vunpack.c.h.b16 %v876
    %v1522 = vunpack.c.l.b16 %v877
    %v1523 = vunpack.c.h.b16 %v877
    %v1524 = vunpack.c.l.b16 %v878
    %v1525 = vunpack.c.h.b16 %v878
    %v1526 = vunpack.c.l.b16 %v879
    %v1527 = vunpack.c.h.b16 %v879
    %v1528 = vunpack.c.l.b16 %v880
    %v1529 = vunpack.c.h.b16 %v880
    %v1530 = vunpack.c.l.b16 %v881
    %v1531 = vunpack.c.h.b16 %v881
    %v1532 = vunpack.c.l.b16 %v882
    %v1533 = vunpack.c.h.b16 %v882
    %v1534 = vunpack.c.l.b16 %v883
    %v1535 = vunpack.c.h.b16 %v883
    %v1536 = vunpack.c.l.b16 %v884
    %v1537 = vunpack.c.h.b16 %v884
    %v1538 = vunpack.c.l.b16 %v885
    %v1539 = vunpack.c.h.b16 %v885
    %v1540 = vunpack.c.l.b16 %v886
    %v1541 = vunpack.c.h.b16 %v886
    %v1542 = vunpack.c.l.b16 %v887
    %v1543 = vunpack.c.h.b16 %v887
    %v1544 = vunpack.c.l.b16 %v888
    %v1545 = vunpack.c.h.b16 %v888
    %v1546 = vunpack.c.l.b16 %v889
    %v1547 = vunpack.c.h.b16 %v889
    %v1548 = vunpack.c.l.b16 %v890
    %v1549 = vunpack.c.h.b16 %v890
    %v1550 = vunpack.c.l.b16 %v891
    %v1551 = vunpack.c.h.b16 %v891
    %v1552 = vunpack.c.l.b16 %v892
    %v1553 = vunpack.c.h.b16 %v892
    %v1554 = vunpack.c.l.b16 %v893
    %v1555 = vunpack.c.h.b16 %v893
    %v1556 = vunpack.c.l.b16 %v894
    %v1557 = vunpack.c.h.b16 %v894
    %v1558 = vunpack.c.l.b16 %v895
    %v1559 = vunpack.c.h.b16 %v895
    %v1560 = vunpack.c.l.b16 %v896
    %v1561 = vunpack.c.h.b16 %v896
    %v1562 = vunpack.c.l.b16 %v897
    %v1563 = vunpack.c.h.b16 %v897
    %v1564 = vunpack.c.l.b16 %v898
    %v1565 = vunpack.c.h.b16 %v898
    %v1566 = vunpack.c.l.b16 %v899
    %v1567 = vunpack.c.h.b16 %v899
    %v1568 = vunpack.c.l.b16 %v900
    %v1569 = vunpack.c.h.b16 %v900
    %v1570 = vunpack.c.l.b16 %v901
    %v1571 = vunpack.c.h.b16 %v901
    %v1572 = vunpack.c.l.b16 %v902
    %v1573 = vunpack.c.h.b16 %v902
    %v1574 = vunpack.c.l.b16 %v903
    %v1575 = vunpack.c.h.b16 %v903
    %v1576 = vunpack.c.l.b16 %v904
    %v1577 = vunpack.c.h.b16 %v904
    %v1578 = vunpack.c.l.b16 %v905
    %v1579 = vunpack.c.h.b16 %v905
    %v1580 = vunpack.c.l.b16 %v906
    %v1581 = vunpack.c.h.b16 %v906
    %v1582 = vunpack.c.l.b16 %v907
    %v1583 = vunpack.c.h.b16 %v907
    %v1584 = vunpack.c.l.b16 %v908
    %v1585 = vunpack.c.h.b16 %v908
    %v1586 = vunpack.c.l.b16 %v909
    %v1587 = vunpack.c.h.b16 %v909
    %v1588 = vunpack.c.l.b16 %v910
    %v1589 = vunpack.c.h.b16 %v910
    %v1590 = vunpack.c.l.b16 %v911
    %v1591 = vunpack.c.h.b16 %v911
    %v1592 = vunpack.c.l.b16 %v912
    %v1593 = vunpack.c.h.b16 %v912
    %v1594 = vunpack.c.l.b16 %v913
    %v1595 = vunpack.c.h.b16 %v913
    %v1596 = vunpack.c.l.b16 %v914
    %v1597 = vunpack.c.h.b16 %v914
    %v1598 = vunpack.c.l.b16 %v915
    %v1599 = vunpack.c.h.b16 %v915
    %v1600 = vunpack.c.l.b16 %v916
    %v1601 = vunpack.c.h.b16 %v916
    %v1602 = vunpack.c.l.b16 %v917
    %v1603 = vunpack.c.h.b16 %v917
    %v1604 = vunpack.c.l.b16 %v918
    %v1605 = vunpack.c.h.b16 %v918
    %v1606 = vunpack.c.l.b16 %v919
    %v1607 = vunpack.c.h.b16 %v919
    %v1608 = vunpack.c.l.b16 %v920
    %v1609 = vunpack.c.h.b16 %v920
    %v1610 = vunpack.c.l.b16 %v921
    %v1611 = vunpack.c.h.b16 %v921
    %v1612 = vunpack.c.l.b16 %v922
    %v1613 = vunpack.c.h.b16 %v922
    %v1614 = vunpack.c.l.b16 %v923
    %v1615 = vunpack.c.h.b16 %v923
    %v1616 = vunpack.c.l.b16 %v924
    %v1617 = vunpack.c.h.b16 %v924
    %v1618 = vunpack.c.l.b16 %v925
    %v1619 = vunpack.c.h.b16 %v925
    %v1620 = vunpack.c.l.b16 %v926
    %v1621 = vunpack.c.h.b16 %v926
    %v1622 = vunpack.c.l.b16 %v927
    %v1623 = vunpack.c.h.b16 %v927
    %v1624 = vunpack.c.l.b16 %v928
    %v1625 = vunpack.c.h.b16 %v928
    %v1626 = vunpack.c.l.b16 %v929
    %v1627 = vunpack.c.h.b16 %v929
    %v1628 = vunpack.c.l.b16 %v930
    %v1629 = vunpack.c.h.b16 %v930
    %v1630 = vunpack.c.l.b16 %v931
    %v1631 = vunpack.c.h.b16 %v931
    %v1632 = vunpack.c.l.b16 %v932
    %v1633 = vunpack.c.h.b16 %v932
    %v1634 = vunpack.c.l.b16 %v933
    %v1635 = vunpack.c.h.b16 %v933
    %v1636 = vunpack.c.l.b16 %v934
    %v1637 = vunpack.c.h.b16 %v934
    %v1638 = vunpack.c.l.b16 %v935
    %v1639 = vunpack.c.h.b16 %v935
    %v1640 = vunpack.c.l.b16 %v936
    %v1641 = vunpack.c.h.b16 %v936
    %v1642 = vunpack.c.l.b16 %v937
    %v1643 = vunpack.c.h.b16 %v937
    %v1644 = vunpack.c.l.b16 %v938
    %v1645 = vunpack.c.h.b16 %v938
    %v1646 = vunpack.c.l.b16 %v939
    %v1647 = vunpack.c.h.b16 %v939
    %v1648 = vunpack.c.l.b16 %v940
    %v1649 = vunpack.c.h.b16 %v940
    %v1650 = vunpack.c.l.b16 %v941
    %v1651 = vunpack.c.h.b16 %v941
    %v1652 = vunpack.c.l.b16 %v942
    %v1653 = vunpack.c.h.b16 %v942
    %v1654 = vunpack.c.l.b16 %v943
    %v1655 = vunpack.c.h.b16 %v943
    %v1656 = vunpack.c.l.b16 %v944
    %v1657 = vunpack.c.h.b16 %v944
    %v1658 = vunpack.c.l.b16 %v945
    %v1659 = vunpack.c.h.b16 %v945
    %v1660 = vunpack.c.l.b16 %v946
    %v1661 = vunpack.c.h.b16 %v946
    %v1662 = vunpack.c.l.b16 %v947
    %v1663 = vunpack.c.h.b16 %v947
    %v1664 = vunpack.c.l.b16 %v948
    %v1665 = vunpack.c.h.b16 %v948
    %v1666 = vunpack.c.l.b16 %v949
    %v1667 = vunpack.c.h.b16 %v949
    %v1668 = vunpack.c.l.b16 %v950
    %v1669 = vunpack.c.h.b16 %v950
    %v1670 = vunpack.c.l.b16 %v951
    %v1671 = vunpack.c.h.b16 %v951
    %v1672 = vunpack.c.l.b16 %v952
    %v1673 = vunpack.c.h.b16 %v952
    %v1674 = vunpack.c.l.b16 %v953
    %v1675 = vunpack.c.h.b16 %v953
    %v1676 = vunpack.c.l.b16 %v954
    %v1677 = vunpack.c.h.b16 %v954
    %v1678 = vunpack.c.l.b16 %v955
    %v1679 = vunpack.c.h.b16 %v955
    %v1680 = vunpack.c.l.b16 %v956
    %v1681 = vunpack.c.h.b16 %v956
    %v1682 = vunpack.c.l.b16 %v957
    %v1683 = vunpack.c.h.b16 %v957
    %v1684 = vunpack.c.l.b16 %v958
    %v1685 = vunpack.c.h.b16 %v958
    %v1686 = vunpack.c.l.b16 %v959
    %v1687 = vunpack.c.h.b16 %v959
    %v1688 = vunpack.c.l.b16 %v960
    %v1689 = vunpack.c.h.b16 %v960
    %v1690 = vunpack.c.l.b16 %v961
    %v1691 = vunpack.c.h.b16 %v961
    %v1692 = vunpack.c.l.b16 %v962
    %v1693 = vunpack.c.h.b16 %v962
    %v1694 = vunpack.c.l.b16 %v963
    %v1695 = vunpack.c.h.b16 %v963
    %v1696 = vunpack.c.l.b16 %v964
    %v1697 = vunpack.c.h.b16 %v964
    %v1698 = vunpack.c.l.b16 %v965
    %v1699 = vunpack.c.h.b16 %v965
    %v1700 = vunpack.c.l.b16 %v966
    %v1701 = vunpack.c.h.b16 %v966
    %v1702 = vunpack.c.l.b16 %v967
    %v1703 = vunpack.c.h.b16 %v967
    %v1704 = vunpack.c.l.b16 %v968
    %v1705 = vunpack.c.h.b16 %v968
    %v1706 = vunpack.c.l.b16 %v969
    %v1707 = vunpack.c.h.b16 %v969
    %v1708 = vunpack.c.l.b16 %v970
    %v1709 = vunpack.c.h.b16 %v970
    %v1710 = vunpack.c.l.b16 %v971
    %v1711 = vunpack.c.h.b16 %v971
    %v1712 = vunpack.c.l.b16 %v972
    %v1713 = vunpack.c.h.b16 %v972
    %v1714 = vunpack.c.l.b16 %v973
    %v1715 = vunpack.c.h.b16 %v973
    %v1716 = vunpack.c.l.b16 %v974
    %v1717 = vunpack.c.h.b16 %v974
    %v1718 = vunpack.c.l.b16 %v975
    %v1719 = vunpack.c.h.b16 %v975
    %v1720 = vunpack.c.l.b16 %v976
    %v1721 = vunpack.c.h.b16 %v976
    %v1722 = vunpack.c.l.b16 %v977
    %v1723 = vunpack.c.h.b16 %v977
    %v1724 = vunpack.c.l.b16 %v978
    %v1725 = vunpack.c.h.b16 %v978
    %v1726 = vunpack.c.l.b16 %v979
    %v1727 = vunpack.c.h.b16 %v979
    %v1728 = vunpack.c.l.b16 %v980
    %v1729 = vunpack.c.h.b16 %v980
    %v1730 = vunpack.c.l.b16 %v981
    %v1731 = vunpack.c.h.b16 %v981
    %v1732 = vunpack.c.l.b16 %v982
    %v1733 = vunpack.c.h.b16 %v982
    %v1734 = vunpack.c.l.b16 %v983
    %v1735 = vunpack.c.h.b16 %v983
    %v1736 = vunpack.c.l.b16 %v984
    %v1737 = vunpack.c.h.b16 %v984
    %v1738 = vunpack.c.l.b16 %v985
    %v1739 = vunpack.c.h.b16 %v985
    %v1740 = vunpack.c.l.b16 %v986
    %v1741 = vunpack.c.h.b16 %v986
    %v1742 = vunpack.c.l.b16 %v987
    %v1743 = vunpack.c.h.b16 %v987
    %v1744 = vunpack.c.l.b16 %v988
    %v1745 = vunpack.c.h.b16 %v988
    %v1746 = vunpack.c.l.b16 %v989
    %v1747 = vunpack.c.h.b16 %v989
    %v1748 = vunpack.c.l.b16 %v990
    %v1749 = vunpack.c.h.b16 %v990
    %v1750 = vunpack.c.l.b16 %v991
    %v1751 = vunpack.c.h.b16 %v991
    %v1752 = vunpack.c.l.b16 %v992
    %v1753 = vunpack.c.h.b16 %v992
    %v1754 = vunpack.c.l.b16 %v993
    %v1755 = vunpack.c.h.b16 %v993
    %v1756 = vunpack.c.l.b16 %v994
    %v1757 = vunpack.c.h.b16 %v994
    %v1758 = vunpack.c.l.b16 %v995
    %v1759 = vunpack.c.h.b16 %v995
    %v1760 = vunpack.c.l.b16 %v996
    %v1761 = vunpack.c.h.b16 %v996
    %v1762 = vunpack.c.l.b16 %v997
    %v1763 = vunpack.c.h.b16 %v997
    %v1764 = vunpack.c.l.b16 %v998
    %v1765 = vunpack.c.h.b16 %v998
    %v1766 = vunpack.c.l.b16 %v999
    %v1767 = vunpack.c.h.b16 %v999
    %v1768 = vunpack.c.l.b16 %v1000
    %v1769 = vunpack.c.h.b16 %v1000
    %v1770 = vunpack.c.l.b16 %v1001
    %v1771 = vunpack.c.h.b16 %v1001
    %v1772 = vunpack.c.l.b16 %v1002
    %v1773 = vunpack.c.h.b16 %v1002
    %v1774 = vunpack.c.l.b16 %v1003
    %v1775 = vunpack.c.h.b16 %v1003
    %v1776 = vunpack.c.l.b16 %v1004
    %v1777 = vunpack.c.h.b16 %v1004
    %v1778 = vunpack.c.l.b16 %v1005
    %v1779 = vunpack.c.h.b16 %v1005
    %v1780 = vunpack.c.l.b16 %v1006
    %v1781 = vunpack.c.h.b16 %v1006
    %v1782 = vunpack.c.l.b16 %v1007
    %v1783 = vunpack.c.h.b16 %v1007
    %v1784 = vunpack.c.l.b16 %v1008
    %v1785 = vunpack.c.h.b16 %v1008
    %v1786 = vunpack.c.l.b16 %v1009
    %v1787 = vunpack.c.h.b16 %v1009
    %v1788 = vunpack.c.l.b16 %v1010
    %v1789 = vunpack.c.h.b16 %v1010
    %v1790 = vunpack.c.l.b16 %v1011
    %v1791 = vunpack.c.h.b16 %v1011
    %v1792 = vunpack.c.l.b16 %v1012
    %v1793 = vunpack.c.h.b16 %v1012
    %v1794 = vunpack.c.l.b16 %v1013
    %v1795 = vunpack.c.h.b16 %v1013
    %v1796 = vunpack.c.l.b16 %v1014
    %v1797 = vunpack.c.h.b16 %v1014
    %v1798 = vunpack.c.l.b16 %v1015
    %v1799 = vunpack.c.h.b16 %v1015
    %v1800 = vunpack.c.l.b16 %v1016
    %v1801 = vunpack.c.h.b16 %v1016
    %v1802 = vunpack.c.l.b16 %v1017
    %v1803 = vunpack.c.h.b16 %v1017
    %v1804 = vunpack.c.l.b16 %v1018
    %v1805 = vunpack.c.h.b16 %v1018
    %v1806 = vunpack.c.l.b16 %v1019
    %v1807 = vunpack.c.h.b16 %v1019
    %v1808 = vpack.c.b16 %v1304, %v1296
    %v1809 = vpack.c.b16 %v1305, %v1297
    %v1810 = vpack.c.b16 %v1306, %v1298
    %v1811 = vpack.c.b16 %v1307, %v1299
    %v1812 = vpack.c.b16 %v1308, %v1300
    %v1813 = vpack.c.b16 %v1309, %v1301
    %v1814 = vpack.c.b16 %v1310, %v1302
    %v1815 = vpack.c.b16 %v1311, %v1303
    %v1816 = vpack.c.b16 %v1320, %v1312
    %v1817 = vpack.c.b16 %v1321, %v1313
    %v1818 = vpack.c.b16 %v1322, %v1314
    %v1819 = vpack.c.b16 %v1323, %v1315
    %v1820 = vpack.c.b16 %v1324, %v1316
    %v1821 = vpack.c.b16 %v1325, %v1317
    %v1822 = vpack.c.b16 %v1326, %v1318
    %v1823 = vpack.c.b16 %v1327, %v1319
    %v1824 = vpack.c.b16 %v1336, %v1328
    %v1825 = vpack.c.b16 %v1337, %v1329
    %v1826 = vpack.c.b16 %v1338, %v1330
    %v1827 = vpack.c.b16 %v1339, %v1331
    %v1828 = vpack.c.b16 %v1340, %v1332
    %v1829 = vpack.c.b16 %v1341, %v1333
    %v1830 = vpack.c.b16 %v1342, %v1334
    %v1831 = vpack.c.b16 %v1343, %v1335
    %v1832 = vpack.c.b16 %v1352, %v1344
    %v1833 = vpack.c.b16 %v1353, %v1345
    %v1834 = vpack.c.b16 %v1354, %v1346
    %v1835 = vpack.c.b16 %v1355, %v1347
    %v1836 = vpack.c.b16 %v1356, %v1348
    %v1837 = vpack.c.b16 %v1357, %v1349
    %v1838 = vpack.c.b16 %v1358, %v1350
    %v1839 = vpack.c.b16 %v1359, %v1351
    %v1840 = vpack.c.b16 %v1368, %v1360
    %v1841 = vpack.c.b16 %v1369, %v1361
    %v1842 = vpack.c.b16 %v1370, %v1362
    %v1843 = vpack.c.b16 %v1371, %v1363
    %v1844 = vpack.c.b16 %v1372, %v1364
    %v1845 = vpack.c.b16 %v1373, %v1365
    %v1846 = vpack.c.b16 %v1374, %v1366
    %v1847 = vpack.c.b16 %v1375, %v1367
    %v1848 = vpack.c.b16 %v1384, %v1376
    %v1849 = vpack.c.b16 %v1385, %v1377
    %v1850 = vpack.c.b16 %v1386, %v1378
    %v1851 = vpack.c.b16 %v1387, %v1379
    %v1852 = vpack.c.b16 %v1388, %v1380
    %v1853 = vpack.c.b16 %v1389, %v1381
    %v1854 = vpack.c.b16 %v1390, %v1382
    %v1855 = vpack.c.b16 %v1391, %v1383
    %v1856 = vpack.c.b16 %v1400, %v1392
    %v1857 = vpack.c.b16 %v1401, %v1393
    %v1858 = vpack.c.b16 %v1402, %v1394
    %v1859 = vpack.c.b16 %v1403, %v1395
    %v1860 = vpack.c.b16 %v1404, %v1396
    %v1861 = vpack.c.b16 %v1405, %v1397
    %v1862 = vpack.c.b16 %v1406, %v1398
    %v1863 = vpack.c.b16 %v1407, %v1399
    %v1864 = vpack.c.b16 %v1416, %v1408
    %v1865 = vpack.c.b16 %v1417, %v1409
    %v1866 = vpack.c.b16 %v1418, %v1410
    %v1867 = vpack.c.b16 %v1419, %v1411
    %v1868 = vpack.c.b16 %v1420, %v1412
    %v1869 = vpack.c.b16 %v1421, %v1413
    %v1870 = vpack.c.b16 %v1422, %v1414
    %v1871 = vpack.c.b16 %v1423, %v1415
    %v1872 = vpack.c.b16 %v1432, %v1424
    %v1873 = vpack.c.b16 %v1433, %v1425
    %v1874 = vpack.c.b16 %v1434, %v1426
    %v1875 = vpack.c.b16 %v1435, %v1427
    %v1876 = vpack.c.b16 %v1436, %v1428
    %v1877 = vpack.c.b16 %v1437, %v1429
    %v1878 = vpack.c.b16 %v1438, %v1430
    %v1879 = vpack.c.b16 %v1439, %v1431
    %v1880 = vpack.c.b16 %v1448, %v1440
    %v1881 = vpack.c.b16 %v1449, %v1441
    %v1882 = vpack.c.b16 %v1450, %v1442
    %v1883 = vpack.c.b16 %v1451, %v1443
    %v1884 = vpack.c.b16 %v1452, %v1444
    %v1885 = vpack.c.b16 %v1453, %v1445
    %v1886 = vpack.c.b16 %v1454, %v1446
    %v1887 = vpack.c.b16 %v1455, %v1447
    %v1888 = vpack.c.b16 %v1464, %v1456
    %v1889 = vpack.c.b16 %v1465, %v1457
    %v1890 = vpack.c.b16 %v1466, %v1458
    %v1891 = vpack.c.b16 %v1467, %v1459
    %v1892 = vpack.c.b16 %v1468, %v1460
    %v1893 = vpack.c.b16 %v1469, %v1461
    %v1894 = vpack.c.b16 %v1470, %v1462
    %v1895 = vpack.c.b16 %v1471, %v1463
    %v1896 = vpack.c.b16 %v1480, %v1472
    %v1897 = vpack.c.b16 %v1481, %v1473
    %v1898 = vpack.c.b16 %v1482, %v1474
    %v1899 = vpack.c.b16 %v1483, %v1475
    %v1900 = vpack.c.b16 %v1484, %v1476
    %v1901 = vpack.c.b16 %v1485, %v1477
    %v1902 = vpack.c.b16 %v1486, %v1478
    %v1903 = vpack.c.b16 %v1487, %v1479
    %v1904 = vpack.c.b16 %v1496, %v1488
    %v1905 = vpack.c.b16 %v1497, %v1489
    %v1906 = vpack.c.b16 %v1498, %v1490
    %v1907 = vpack.c.b16 %v1499, %v1491
    %v1908 = vpack.c.b16 %v1500, %v1492
    %v1909 = vpack.c.b16 %v1501, %v1493
    %v1910 = vpack.c.b16 %v1502, %v1494
    %v1911 = vpack.c.b16 %v1503, %v1495
    %v1912 = vpack.c.b16 %v1512, %v1504
    %v1913 = vpack.c.b16 %v1513, %v1505
    %v1914 = vpack.c.b16 %v1514, %v1506
    %v1915 = vpack.c.b16 %v1515, %v1507
    %v1916 = vpack.c.b16 %v1516, %v1508
    %v1917 = vpack.c.b16 %v1517, %v1509
    %v1918 = vpack.c.b16 %v1518, %v1510
    %v1919 = vpack.c.b16 %v1519, %v1511
    %v1920 = vpack.c.b16 %v1528, %v1520
    %v1921 = vpack.c.b16 %v1529, %v1521
    %v1922 = vpack.c.b16 %v1530, %v1522
    %v1923 = vpack.c.b16 %v1531, %v1523
    %v1924 = vpack.c.b16 %v1532, %v1524
    %v1925 = vpack.c.b16 %v1533, %v1525
    %v1926 = vpack.c.b16 %v1534, %v1526
    %v1927 = vpack.c.b16 %v1535, %v1527
    %v1928 = vpack.c.b16 %v1544, %v1536
    %v1929 = vpack.c.b16 %v1545, %v1537
    %v1930 = vpack.c.b16 %v1546, %v1538
    %v1931 = vpack.c.b16 %v1547, %v1539
    %v1932 = vpack.c.b16 %v1548, %v1540
    %v1933 = vpack.c.b16 %v1549, %v1541
    %v1934 = vpack.c.b16 %v1550, %v1542
    %v1935 = vpack.c.b16 %v1551, %v1543
    %v1936 = vpack.c.b16 %v1560, %v1552
    %v1937 = vpack.c.b16 %v1561, %v1553
    %v1938 = vpack.c.b16 %v1562, %v1554
    %v1939 = vpack.c.b16 %v1563, %v1555
    %v1940 = vpack.c.b16 %v1564, %v1556
    %v1941 = vpack.c.b16 %v1565, %v1557
    %v1942 = vpack.c.b16 %v1566, %v1558
    %v1943 = vpack.c.b16 %v1567, %v1559
    %v1944 = vpack.c.b16 %v1576, %v1568
    %v1945 = vpack.c.b16 %v1577, %v1569
    %v1946 = vpack.c.b16 %v1578, %v1570
    %v1947 = vpack.c.b16 %v1579, %v1571
    %v1948 = vpack.c.b16 %v1580, %v1572
    %v1949 = vpack.c.b16 %v1581, %v1573
    %v1950 = vpack.c.b16 %v1582, %v1574
    %v1951 = vpack.c.b16 %v1583, %v1575
    %v1952 = vpack.c.b16 %v1592, %v1584
    %v1953 = vpack.c.b16 %v1593, %v1585
    %v1954 = vpack.c.b16 %v1594, %v1586
    %v1955 = vpack.c.b16 %v1595, %v1587
    %v1956 = vpack.c.b16 %v1596, %v1588
    %v1957 = vpack.c.b16 %v1597, %v1589
    %v1958 = vpack.c.b16 %v1598, %v1590
    %v1959 = vpack.c.b16 %v1599, %v1591
    %v1960 = vpack.c.b16 %v1608, %v1600
    %v1961 = vpack.c.b16 %v1609, %v1601
    %v1962 = vpack.c.b16 %v1610, %v1602
    %v1963 = vpack.c.b16 %v1611, %v1603
    %v1964 = vpack.c.b16 %v1612, %v1604
    %v1965 = vpack.c.b16 %v1613, %v1605
    %v1966 = vpack.c.b16 %v1614, %v1606
    %v1967 = vpack.c.b16 %v1615, %v1607
    %v1968 = vpack.c.b16 %v1624, %v1616
    %v1969 = vpack.c.b16 %v1625, %v1617
    %v1970 = vpack.c.b16 %v1626, %v1618
    %v1971 = vpack.c.b16 %v1627, %v1619
    %v1972 = vpack.c.b16 %v1628, %v1620
    %v1973 = vpack.c.b16 %v1629, %v1621
    %v1974 = vpack.c.b16 %v1630, %v1622
    %v1975 = vpack.c.b16 %v1631, %v1623
    %v1976 = vpack.c.b16 %v1640, %v1632
    %v1977 = vpack.c.b16 %v1641, %v1633
    %v1978 = vpack.c.b16 %v1642, %v1634
    %v1979 = vpack.c.b16 %v1643, %v1635
    %v1980 = vpack.c.b16 %v1644, %v1636
    %v1981 = vpack.c.b16 %v1645, %v1637
    %v1982 = vpack.c.b16 %v1646, %v1638
    %v1983 = vpack.c.b16 %v1647, %v1639
    %v1984 = vpack.c.b16 %v1656, %v1648
    %v1985 = vpack.c.b16 %v1657, %v1649
    %v1986 = vpack.c.b16 %v1658, %v1650
    %v1987 = vpack.c.b16 %v1659, %v1651
    %v1988 = vpack.c.b16 %v1660, %v1652
    %v1989 = vpack.c.b16 %v1661, %v1653
    %v1990 = vpack.c.b16 %v1662, %v1654
    %v1991 = vpack.c.b16 %v1663, %v1655
    %v1992 = vpack.c.b16 %v1672, %v1664
    %v1993 = vpack.c.b16 %v1673, %v1665
    %v1994 = vpack.c.b16 %v1674, %v1666
    %v1995 = vpack.c.b16 %v1675, %v1667
    %v1996 = vpack.c.b16 %v1676, %v1668
    %v1997 = vpack.c.b16 %v1677, %v1669
    %v1998 = vpack.c.b16 %v1678, %v1670
    %v1999 = vpack.c.b16 %v1679, %v1671
    %v2000 = vpack.c.b16 %v1688, %v1680
    %v2001 = vpack.c.b16 %v1689, %v1681
    %v2002 = vpack.c.b16 %v1690, %v1682
    %v2003 = vpack.c.b16 %v1691, %v1683
    %v2004 = vpack.c.b16 %v1692, %v1684
    %v2005 = vpack.c.b16 %v1693, %v1685
    %v2006 = vpack.c.b16 %v1694, %v1686
    %v2007 = vpack.c.b16 %v1695, %v1687
    %v2008 = vpack.c.b16 %v1704, %v1696
    %v2009 = vpack.c.b16 %v1705, %v1697
    %v2010 = vpack.c.b16 %v1706, %v1698
    %v2011 = vpack.c.b16 %v1707, %v1699
    %v2012 = vpack.c.b16 %v1708, %v1700
    %v2013 = vpack.c.b16 %v1709, %v1701
    %v2014 = vpack.c.b16 %v1710, %v1702
    %v2015 = vpack.c.b16 %v1711, %v1703
    %v2016 = vpack.c.b16 %v1720, %v1712
    %v2017 = vpack.c.b16 %v1721, %v1713
    %v2018 = vpack.c.b16 %v1722, %v1714
    %v2019 = vpack.c.b16 %v1723, %v1715
    %v2020 = vpack.c.b16 %v1724, %v1716
    %v2021 = vpack.c.b16 %v1725, %v1717
    %v2022 = vpack.c.b16 %v1726, %v1718
    %v2023 = vpack.c.b16 %v1727, %v1719
    %v2024 = vpack.c.b16 %v1736, %v1728
    %v2025 = vpack.c.b16 %v1737, %v1729
    %v2026 = vpack.c.b16 %v1738, %v1730
    %v2027 = vpack.c.b16 %v1739, %v1731
    %v2028 = vpack.c.b16 %v1740, %v1732
    %v2029 = vpack.c.b16 %v1741, %v1733
    %v2030 = vpack.c.b16 %v1742, %v1734
    %v2031 = vpack.c.b16 %v1743, %v1735
    %v2032 = vpack.c.b16 %v1752, %v1744
    %v2033 = vpack.c.b16 %v1753, %v1745
    %v2034 = vpack.c.b16 %v1754, %v1746
    %v2035 = vpack.c.b16 %v1755, %v1747
    %v2036 = vpack.c.b16 %v1756, %v1748
    %v2037 = vpack.c.b16 %v1757, %v1749
    %v2038 = vpack.c.b16 %v1758, %v1750
    %v2039 = vpack.c.b16 %v1759, %v1751
    %v2040 = vpack.c.b16 %v1768, %v1760
    %v2041 = vpack.c.b16 %v1769, %v1761
    %v2042 = vpack.c.b16 %v1770, %v1762
    %v2043 = vpack.c.b16 %v1771, %v1763
    %v2044 = vpack.c.b16 %v1772, %v1764
    %v2045 = vpack.c.b16 %v1773, %v1765
    %v2046 = vpack.c.b16 %v1774, %v1766
    %v2047 = vpack.c.b16 %v1775, %v1767
    %v2048 = vpack.c.b16 %v1784, %v1776
    %v2049 = vpack.c.b16 %v1785, %v1777
    %v2050 = vpack.c.b16 %v1786, %v1778
    %v2051 = vpack.c.b16 %v1787, %v1779
    %v2052 = vpack.c.b16 %v1788, %v1780
    %v2053 = vpack.c.b16 %v1789, %v1781
    %v2054 = vpack.c.b16 %v1790, %v1782
    %v2055 = vpack.c.b16 %v1791, %v1783
    %v2056 = vpack.c.b16 %v1800, %v1792
    %v2057 = vpack.c.b16 %v1801, %v1793
    %v2058 = vpack.c.b16 %v1802, %v1794
    %v2059 = vpack.c.b16 %v1803, %v1795
    %v2060 = vpack.c.b16 %v1804, %v1796
    %v2061 = vpack.c.b16 %v1805, %v1797
    %v2062 = vpack.c.b16 %v1806, %v1798
    %v2063 = vpack.c.b16 %v1807, %v1799
    %2320 = vmatpush.bf16.msra.mxu0 %v1864
    %2321 = vmatpush.bf16.msra.mxu0 %v1856
    %2322 = vmatpush.bf16.msra.mxu0 %v1848
    %2323 = vmatpush.bf16.msra.mxu0 %v1840
    %2324 = vmatpush.bf16.msra.mxu0 %v1832
    %2325 = vmatpush.bf16.msra.mxu0 %v1824
    %2326 = vmatpush.bf16.msra.mxu0 %v1816
    %2327 = vmatpush.bf16.msra.mxu0 %v1808
    %2328 = vmatmul.bf16.gmra.mxu0 %v760
    %v2329 = vpop.f32.mrf.mxu0
    %v2330 = vadd.f32 %v1024, %v2329
    %v2331 = vpop.f32.mrf.mxu0
    %2332 = vdwg.mxu0
    %2333 = vmatpush.bf16.msra.mxu0 %v1928
    %2334 = vmatpush.bf16.msra.mxu0 %v1920
    %2335 = vmatpush.bf16.msra.mxu0 %v1912
    %2336 = vmatpush.bf16.msra.mxu0 %v1904
    %2337 = vmatpush.bf16.msra.mxu0 %v1896
    %2338 = vmatpush.bf16.msra.mxu0 %v1888
    %2339 = vmatpush.bf16.msra.mxu0 %v1880
    %2340 = vmatpush.bf16.msra.mxu0 %v1872
    %2341 = vmatmul.bf16.gmra.mxu0 %v761
    %v2342 = vpop.f32.mrf.mxu0
    %v2343 = vadd.f32 %v2330, %v2342
    %v2344 = vpop.f32.mrf.mxu0
    %2345 = vdwg.mxu0
    %2346 = vmatpush.bf16.msra.mxu0 %v1992
    %2347 = vmatpush.bf16.msra.mxu0 %v1984
    %2348 = vmatpush.bf16.msra.mxu0 %v1976
    %2349 = vmatpush.bf16.msra.mxu0 %v1968
    %2350 = vmatpush.bf16.msra.mxu0 %v1960
    %2351 = vmatpush.bf16.msra.mxu0 %v1952
    %2352 = vmatpush.bf16.msra.mxu0 %v1944
    %2353 = vmatpush.bf16.msra.mxu0 %v1936
    %2354 = vmatmul.bf16.gmra.mxu0 %v762
    %v2355 = vpop.f32.mrf.mxu0
    %v2356 = vadd.f32 %v2343, %v2355
    %v2357 = vpop.f32.mrf.mxu0
    %2358 = vdwg.mxu0
    %2359 = vmatpush.bf16.msra.mxu0 %v2056
    %2360 = vmatpush.bf16.msra.mxu0 %v2048
    %2361 = vmatpush.bf16.msra.mxu0 %v2040
    %2362 = vmatpush.bf16.msra.mxu0 %v2032
    %2363 = vmatpush.bf16.msra.mxu0 %v2024
    %2364 = vmatpush.bf16.msra.mxu0 %v2016
    %2365 = vmatpush.bf16.msra.mxu0 %v2008
    %2366 = vmatpush.bf16.msra.mxu0 %v2000
    %2367 = vmatmul.bf16.gmra.mxu0 %v763
    %v2368 = vpop.f32.mrf.mxu0
    %v2369 = vadd.f32 %v2356, %v2368
    %v2370 = vpop.f32.mrf.mxu0
    %2371 = vdwg.mxu0
    %2372 = vmatpush.bf16.msra.mxu0 %v1865
    %2373 = vmatpush.bf16.msra.mxu0 %v1857
    %2374 = vmatpush.bf16.msra.mxu0 %v1849
    %2375 = vmatpush.bf16.msra.mxu0 %v1841
    %2376 = vmatpush.bf16.msra.mxu0 %v1833
    %2377 = vmatpush.bf16.msra.mxu0 %v1825
    %2378 = vmatpush.bf16.msra.mxu0 %v1817
    %2379 = vmatpush.bf16.msra.mxu0 %v1809
    %2380 = vmatmul.bf16.gmra.mxu0 %v760
    %v2381 = vpop.f32.mrf.mxu0
    %v2382 = vadd.f32 %v1025, %v2381
    %v2383 = vpop.f32.mrf.mxu0
    %2384 = vdwg.mxu0
    %2385 = vmatpush.bf16.msra.mxu0 %v1929
    %2386 = vmatpush.bf16.msra.mxu0 %v1921
    %2387 = vmatpush.bf16.msra.mxu0 %v1913
    %2388 = vmatpush.bf16.msra.mxu0 %v1905
    %2389 = vmatpush.bf16.msra.mxu0 %v1897
    %2390 = vmatpush.bf16.msra.mxu0 %v1889
    %2391 = vmatpush.bf16.msra.mxu0 %v1881
    %2392 = vmatpush.bf16.msra.mxu0 %v1873
    %2393 = vmatmul.bf16.gmra.mxu0 %v761
    %v2394 = vpop.f32.mrf.mxu0
    %v2395 = vadd.f32 %v2382, %v2394
    %v2396 = vpop.f32.mrf.mxu0
    %2397 = vdwg.mxu0
    %2398 = vmatpush.bf16.msra.mxu0 %v1993
    %2399 = vmatpush.bf16.msra.mxu0 %v1985
    %2400 = vmatpush.bf16.msra.mxu0 %v1977
    %2401 = vmatpush.bf16.msra.mxu0 %v1969
    %2402 = vmatpush.bf16.msra.mxu0 %v1961
    %2403 = vmatpush.bf16.msra.mxu0 %v1953
    %2404 = vmatpush.bf16.msra.mxu0 %v1945
    %2405 = vmatpush.bf16.msra.mxu0 %v1937
    %2406 = vmatmul.bf16.gmra.mxu0 %v762
    %v2407 = vpop.f32.mrf.mxu0
    %v2408 = vadd.f32 %v2395, %v2407
    %v2409 = vpop.f32.mrf.mxu0
    %2410 = vdwg.mxu0
    %2411 = vmatpush.bf16.msra.mxu0 %v2057
    %2412 = vmatpush.bf16.msra.mxu0 %v2049
    %2413 = vmatpush.bf16.msra.mxu0 %v2041
    %2414 = vmatpush.bf16.msra.mxu0 %v2033
    %2415 = vmatpush.bf16.msra.mxu0 %v2025
    %2416 = vmatpush.bf16.msra.mxu0 %v2017
    %2417 = vmatpush.bf16.msra.mxu0 %v2009
    %2418 = vmatpush.bf16.msra.mxu0 %v2001
    %2419 = vmatmul.bf16.gmra.mxu0 %v763
    %v2420 = vpop.f32.mrf.mxu0
    %v2421 = vadd.f32 %v2408, %v2420
    %v2422 = vpop.f32.mrf.mxu0
    %2423 = vdwg.mxu0
    %2424 = vmatpush.bf16.msra.mxu0 %v1866
    %2425 = vmatpush.bf16.msra.mxu0 %v1858
    %2426 = vmatpush.bf16.msra.mxu0 %v1850
    %2427 = vmatpush.bf16.msra.mxu0 %v1842
    %2428 = vmatpush.bf16.msra.mxu0 %v1834
    %2429 = vmatpush.bf16.msra.mxu0 %v1826
    %2430 = vmatpush.bf16.msra.mxu0 %v1818
    %2431 = vmatpush.bf16.msra.mxu0 %v1810
    %2432 = vmatmul.bf16.gmra.mxu0 %v760
    %v2433 = vpop.f32.mrf.mxu0
    %v2434 = vadd.f32 %v1026, %v2433
    %v2435 = vpop.f32.mrf.mxu0
    %2436 = vdwg.mxu0
    %2437 = vmatpush.bf16.msra.mxu0 %v1930
    %2438 = vmatpush.bf16.msra.mxu0 %v1922
    %2439 = vmatpush.bf16.msra.mxu0 %v1914
    %2440 = vmatpush.bf16.msra.mxu0 %v1906
    %2441 = vmatpush.bf16.msra.mxu0 %v1898
    %2442 = vmatpush.bf16.msra.mxu0 %v1890
    %2443 = vmatpush.bf16.msra.mxu0 %v1882
    %2444 = vmatpush.bf16.msra.mxu0 %v1874
    %2445 = vmatmul.bf16.gmra.mxu0 %v761
    %v2446 = vpop.f32.mrf.mxu0
    %v2447 = vadd.f32 %v2434, %v2446
    %v2448 = vpop.f32.mrf.mxu0
    %2449 = vdwg.mxu0
    %2450 = vmatpush.bf16.msra.mxu0 %v1994
    %2451 = vmatpush.bf16.msra.mxu0 %v1986
    %2452 = vmatpush.bf16.msra.mxu0 %v1978
    %2453 = vmatpush.bf16.msra.mxu0 %v1970
    %2454 = vmatpush.bf16.msra.mxu0 %v1962
    %2455 = vmatpush.bf16.msra.mxu0 %v1954
    %2456 = vmatpush.bf16.msra.mxu0 %v1946
    %2457 = vmatpush.bf16.msra.mxu0 %v1938
    %2458 = vmatmul.bf16.gmra.mxu0 %v762
    %v2459 = vpop.f32.mrf.mxu0
    %v2460 = vadd.f32 %v2447, %v2459
    %v2461 = vpop.f32.mrf.mxu0
    %2462 = vdwg.mxu0
    %2463 = vmatpush.bf16.msra.mxu0 %v2058
    %2464 = vmatpush.bf16.msra.mxu0 %v2050
    %2465 = vmatpush.bf16.msra.mxu0 %v2042
    %2466 = vmatpush.bf16.msra.mxu0 %v2034
    %2467 = vmatpush.bf16.msra.mxu0 %v2026
    %2468 = vmatpush.bf16.msra.mxu0 %v2018
    %2469 = vmatpush.bf16.msra.mxu0 %v2010
    %2470 = vmatpush.bf16.msra.mxu0 %v2002
    %2471 = vmatmul.bf16.gmra.mxu0 %v763
    %v2472 = vpop.f32.mrf.mxu0
    %v2473 = vadd.f32 %v2460, %v2472
    %v2474 = vpop.f32.mrf.mxu0
    %2475 = vdwg.mxu0
    %2476 = vmatpush.bf16.msra.mxu0 %v1867
    %2477 = vmatpush.bf16.msra.mxu0 %v1859
    %2478 = vmatpush.bf16.msra.mxu0 %v1851
    %2479 = vmatpush.bf16.msra.mxu0 %v1843
    %2480 = vmatpush.bf16.msra.mxu0 %v1835
    %2481 = vmatpush.bf16.msra.mxu0 %v1827
    %2482 = vmatpush.bf16.msra.mxu0 %v1819
    %2483 = vmatpush.bf16.msra.mxu0 %v1811
    %2484 = vmatmul.bf16.gmra.mxu0 %v760
    %v2485 = vpop.f32.mrf.mxu0
    %v2486 = vadd.f32 %v1027, %v2485
    %v2487 = vpop.f32.mrf.mxu0
    %2488 = vdwg.mxu0
    %2489 = vmatpush.bf16.msra.mxu0 %v1931
    %2490 = vmatpush.bf16.msra.mxu0 %v1923
    %2491 = vmatpush.bf16.msra.mxu0 %v1915
    %2492 = vmatpush.bf16.msra.mxu0 %v1907
    %2493 = vmatpush.bf16.msra.mxu0 %v1899
    %2494 = vmatpush.bf16.msra.mxu0 %v1891
    %2495 = vmatpush.bf16.msra.mxu0 %v1883
    %2496 = vmatpush.bf16.msra.mxu0 %v1875
    %2497 = vmatmul.bf16.gmra.mxu0 %v761
    %v2498 = vpop.f32.mrf.mxu0
    %v2499 = vadd.f32 %v2486, %v2498
    %v2500 = vpop.f32.mrf.mxu0
    %2501 = vdwg.mxu0
    %2502 = vmatpush.bf16.msra.mxu0 %v1995
    %2503 = vmatpush.bf16.msra.mxu0 %v1987
    %2504 = vmatpush.bf16.msra.mxu0 %v1979
    %2505 = vmatpush.bf16.msra.mxu0 %v1971
    %2506 = vmatpush.bf16.msra.mxu0 %v1963
    %2507 = vmatpush.bf16.msra.mxu0 %v1955
    %2508 = vmatpush.bf16.msra.mxu0 %v1947
    %2509 = vmatpush.bf16.msra.mxu0 %v1939
    %2510 = vmatmul.bf16.gmra.mxu0 %v762
    %v2511 = vpop.f32.mrf.mxu0
    %v2512 = vadd.f32 %v2499, %v2511
    %v2513 = vpop.f32.mrf.mxu0
    %2514 = vdwg.mxu0
    %2515 = vmatpush.bf16.msra.mxu0 %v2059
    %2516 = vmatpush.bf16.msra.mxu0 %v2051
    %2517 = vmatpush.bf16.msra.mxu0 %v2043
    %2518 = vmatpush.bf16.msra.mxu0 %v2035
    %2519 = vmatpush.bf16.msra.mxu0 %v2027
    %2520 = vmatpush.bf16.msra.mxu0 %v2019
    %2521 = vmatpush.bf16.msra.mxu0 %v2011
    %2522 = vmatpush.bf16.msra.mxu0 %v2003
    %2523 = vmatmul.bf16.gmra.mxu0 %v763
    %v2524 = vpop.f32.mrf.mxu0
    %v2525 = vadd.f32 %v2512, %v2524
    %v2526 = vpop.f32.mrf.mxu0
    %2527 = vdwg.mxu0
    %2528 = vmatpush.bf16.msra.mxu0 %v1868
    %2529 = vmatpush.bf16.msra.mxu0 %v1860
    %2530 = vmatpush.bf16.msra.mxu0 %v1852
    %2531 = vmatpush.bf16.msra.mxu0 %v1844
    %2532 = vmatpush.bf16.msra.mxu0 %v1836
    %2533 = vmatpush.bf16.msra.mxu0 %v1828
    %2534 = vmatpush.bf16.msra.mxu0 %v1820
    %2535 = vmatpush.bf16.msra.mxu0 %v1812
    %2536 = vmatmul.bf16.gmra.mxu0 %v760
    %v2537 = vpop.f32.mrf.mxu0
    %v2538 = vadd.f32 %v1028, %v2537
    %v2539 = vpop.f32.mrf.mxu0
    %2540 = vdwg.mxu0
    %2541 = vmatpush.bf16.msra.mxu0 %v1932
    %2542 = vmatpush.bf16.msra.mxu0 %v1924
    %2543 = vmatpush.bf16.msra.mxu0 %v1916
    %2544 = vmatpush.bf16.msra.mxu0 %v1908
    %2545 = vmatpush.bf16.msra.mxu0 %v1900
    %2546 = vmatpush.bf16.msra.mxu0 %v1892
    %2547 = vmatpush.bf16.msra.mxu0 %v1884
    %2548 = vmatpush.bf16.msra.mxu0 %v1876
    %2549 = vmatmul.bf16.gmra.mxu0 %v761
    %v2550 = vpop.f32.mrf.mxu0
    %v2551 = vadd.f32 %v2538, %v2550
    %v2552 = vpop.f32.mrf.mxu0
    %2553 = vdwg.mxu0
    %2554 = vmatpush.bf16.msra.mxu0 %v1996
    %2555 = vmatpush.bf16.msra.mxu0 %v1988
    %2556 = vmatpush.bf16.msra.mxu0 %v1980
    %2557 = vmatpush.bf16.msra.mxu0 %v1972
    %2558 = vmatpush.bf16.msra.mxu0 %v1964
    %2559 = vmatpush.bf16.msra.mxu0 %v1956
    %2560 = vmatpush.bf16.msra.mxu0 %v1948
    %2561 = vmatpush.bf16.msra.mxu0 %v1940
    %2562 = vmatmul.bf16.gmra.mxu0 %v762
    %v2563 = vpop.f32.mrf.mxu0
    %v2564 = vadd.f32 %v2551, %v2563
    %v2565 = vpop.f32.mrf.mxu0
    %2566 = vdwg.mxu0
    %2567 = vmatpush.bf16.msra.mxu0 %v2060
    %2568 = vmatpush.bf16.msra.mxu0 %v2052
    %2569 = vmatpush.bf16.msra.mxu0 %v2044
    %2570 = vmatpush.bf16.msra.mxu0 %v2036
    %2571 = vmatpush.bf16.msra.mxu0 %v2028
    %2572 = vmatpush.bf16.msra.mxu0 %v2020
    %2573 = vmatpush.bf16.msra.mxu0 %v2012
    %2574 = vmatpush.bf16.msra.mxu0 %v2004
    %2575 = vmatmul.bf16.gmra.mxu0 %v763
    %v2576 = vpop.f32.mrf.mxu0
    %v2577 = vadd.f32 %v2564, %v2576
    %v2578 = vpop.f32.mrf.mxu0
    %2579 = vdwg.mxu0
    %2580 = vmatpush.bf16.msra.mxu0 %v1869
    %2581 = vmatpush.bf16.msra.mxu0 %v1861
    %2582 = vmatpush.bf16.msra.mxu0 %v1853
    %2583 = vmatpush.bf16.msra.mxu0 %v1845
    %2584 = vmatpush.bf16.msra.mxu0 %v1837
    %2585 = vmatpush.bf16.msra.mxu0 %v1829
    %2586 = vmatpush.bf16.msra.mxu0 %v1821
    %2587 = vmatpush.bf16.msra.mxu0 %v1813
    %2588 = vmatmul.bf16.gmra.mxu0 %v760
    %v2589 = vpop.f32.mrf.mxu0
    %v2590 = vadd.f32 %v1029, %v2589
    %v2591 = vpop.f32.mrf.mxu0
    %2592 = vdwg.mxu0
    %2593 = vmatpush.bf16.msra.mxu0 %v1933
    %2594 = vmatpush.bf16.msra.mxu0 %v1925
    %2595 = vmatpush.bf16.msra.mxu0 %v1917
    %2596 = vmatpush.bf16.msra.mxu0 %v1909
    %2597 = vmatpush.bf16.msra.mxu0 %v1901
    %2598 = vmatpush.bf16.msra.mxu0 %v1893
    %2599 = vmatpush.bf16.msra.mxu0 %v1885
    %2600 = vmatpush.bf16.msra.mxu0 %v1877
    %2601 = vmatmul.bf16.gmra.mxu0 %v761
    %v2602 = vpop.f32.mrf.mxu0
    %v2603 = vadd.f32 %v2590, %v2602
    %v2604 = vpop.f32.mrf.mxu0
    %2605 = vdwg.mxu0
    %2606 = vmatpush.bf16.msra.mxu0 %v1997
    %2607 = vmatpush.bf16.msra.mxu0 %v1989
    %2608 = vmatpush.bf16.msra.mxu0 %v1981
    %2609 = vmatpush.bf16.msra.mxu0 %v1973
    %2610 = vmatpush.bf16.msra.mxu0 %v1965
    %2611 = vmatpush.bf16.msra.mxu0 %v1957
    %2612 = vmatpush.bf16.msra.mxu0 %v1949
    %2613 = vmatpush.bf16.msra.mxu0 %v1941
    %2614 = vmatmul.bf16.gmra.mxu0 %v762
    %v2615 = vpop.f32.mrf.mxu0
    %v2616 = vadd.f32 %v2603, %v2615
    %v2617 = vpop.f32.mrf.mxu0
    %2618 = vdwg.mxu0
    %2619 = vmatpush.bf16.msra.mxu0 %v2061
    %2620 = vmatpush.bf16.msra.mxu0 %v2053
    %2621 = vmatpush.bf16.msra.mxu0 %v2045
    %2622 = vmatpush.bf16.msra.mxu0 %v2037
    %2623 = vmatpush.bf16.msra.mxu0 %v2029
    %2624 = vmatpush.bf16.msra.mxu0 %v2021
    %2625 = vmatpush.bf16.msra.mxu0 %v2013
    %2626 = vmatpush.bf16.msra.mxu0 %v2005
    %2627 = vmatmul.bf16.gmra.mxu0 %v763
    %v2628 = vpop.f32.mrf.mxu0
    %v2629 = vadd.f32 %v2616, %v2628
    %v2630 = vpop.f32.mrf.mxu0
    %2631 = vdwg.mxu0
    %2632 = vmatpush.bf16.msra.mxu0 %v1870
    %2633 = vmatpush.bf16.msra.mxu0 %v1862
    %2634 = vmatpush.bf16.msra.mxu0 %v1854
    %2635 = vmatpush.bf16.msra.mxu0 %v1846
    %2636 = vmatpush.bf16.msra.mxu0 %v1838
    %2637 = vmatpush.bf16.msra.mxu0 %v1830
    %2638 = vmatpush.bf16.msra.mxu0 %v1822
    %2639 = vmatpush.bf16.msra.mxu0 %v1814
    %2640 = vmatmul.bf16.gmra.mxu0 %v760
    %v2641 = vpop.f32.mrf.mxu0
    %v2642 = vadd.f32 %v1030, %v2641
    %v2643 = vpop.f32.mrf.mxu0
    %2644 = vdwg.mxu0
    %2645 = vmatpush.bf16.msra.mxu0 %v1934
    %2646 = vmatpush.bf16.msra.mxu0 %v1926
    %2647 = vmatpush.bf16.msra.mxu0 %v1918
    %2648 = vmatpush.bf16.msra.mxu0 %v1910
    %2649 = vmatpush.bf16.msra.mxu0 %v1902
    %2650 = vmatpush.bf16.msra.mxu0 %v1894
    %2651 = vmatpush.bf16.msra.mxu0 %v1886
    %2652 = vmatpush.bf16.msra.mxu0 %v1878
    %2653 = vmatmul.bf16.gmra.mxu0 %v761
    %v2654 = vpop.f32.mrf.mxu0
    %v2655 = vadd.f32 %v2642, %v2654
    %v2656 = vpop.f32.mrf.mxu0
    %2657 = vdwg.mxu0
    %2658 = vmatpush.bf16.msra.mxu0 %v1998
    %2659 = vmatpush.bf16.msra.mxu0 %v1990
    %2660 = vmatpush.bf16.msra.mxu0 %v1982
    %2661 = vmatpush.bf16.msra.mxu0 %v1974
    %2662 = vmatpush.bf16.msra.mxu0 %v1966
    %2663 = vmatpush.bf16.msra.mxu0 %v1958
    %2664 = vmatpush.bf16.msra.mxu0 %v1950
    %2665 = vmatpush.bf16.msra.mxu0 %v1942
    %2666 = vmatmul.bf16.gmra.mxu0 %v762
    %v2667 = vpop.f32.mrf.mxu0
    %v2668 = vadd.f32 %v2655, %v2667
    %v2669 = vpop.f32.mrf.mxu0
    %2670 = vdwg.mxu0
    %2671 = vmatpush.bf16.msra.mxu0 %v2062
    %2672 = vmatpush.bf16.msra.mxu0 %v2054
    %2673 = vmatpush.bf16.msra.mxu0 %v2046
    %2674 = vmatpush.bf16.msra.mxu0 %v2038
    %2675 = vmatpush.bf16.msra.mxu0 %v2030
    %2676 = vmatpush.bf16.msra.mxu0 %v2022
    %2677 = vmatpush.bf16.msra.mxu0 %v2014
    %2678 = vmatpush.bf16.msra.mxu0 %v2006
    %2679 = vmatmul.bf16.gmra.mxu0 %v763
    %v2680 = vpop.f32.mrf.mxu0
    %v2681 = vadd.f32 %v2668, %v2680
    %v2682 = vpop.f32.mrf.mxu0
    %2683 = vdwg.mxu0
    %2684 = vmatpush.bf16.msra.mxu0 %v1871
    %2685 = vmatpush.bf16.msra.mxu0 %v1863
    %2686 = vmatpush.bf16.msra.mxu0 %v1855
    %2687 = vmatpush.bf16.msra.mxu0 %v1847
    %2688 = vmatpush.bf16.msra.mxu0 %v1839
    %2689 = vmatpush.bf16.msra.mxu0 %v1831
    %2690 = vmatpush.bf16.msra.mxu0 %v1823
    %2691 = vmatpush.bf16.msra.mxu0 %v1815
    %2692 = vmatmul.bf16.gmra.mxu0 %v760
    %v2693 = vpop.f32.mrf.mxu0
    %v2694 = vadd.f32 %v1031, %v2693
    %v2695 = vpop.f32.mrf.mxu0
    %2696 = vdwg.mxu0
    %2697 = vmatpush.bf16.msra.mxu0 %v1935
    %2698 = vmatpush.bf16.msra.mxu0 %v1927
    %2699 = vmatpush.bf16.msra.mxu0 %v1919
    %2700 = vmatpush.bf16.msra.mxu0 %v1911
    %2701 = vmatpush.bf16.msra.mxu0 %v1903
    %2702 = vmatpush.bf16.msra.mxu0 %v1895
    %2703 = vmatpush.bf16.msra.mxu0 %v1887
    %2704 = vmatpush.bf16.msra.mxu0 %v1879
    %2705 = vmatmul.bf16.gmra.mxu0 %v761
    %v2706 = vpop.f32.mrf.mxu0
    %v2707 = vadd.f32 %v2694, %v2706
    %v2708 = vpop.f32.mrf.mxu0
    %2709 = vdwg.mxu0
    %2710 = vmatpush.bf16.msra.mxu0 %v1999
    %2711 = vmatpush.bf16.msra.mxu0 %v1991
    %2712 = vmatpush.bf16.msra.mxu0 %v1983
    %2713 = vmatpush.bf16.msra.mxu0 %v1975
    %2714 = vmatpush.bf16.msra.mxu0 %v1967
    %2715 = vmatpush.bf16.msra.mxu0 %v1959
    %2716 = vmatpush.bf16.msra.mxu0 %v1951
    %2717 = vmatpush.bf16.msra.mxu0 %v1943
    %2718 = vmatmul.bf16.gmra.mxu0 %v762
    %v2719 = vpop.f32.mrf.mxu0
    %v2720 = vadd.f32 %v2707, %v2719
    %v2721 = vpop.f32.mrf.mxu0
    %2722 = vdwg.mxu0
    %2723 = vmatpush.bf16.msra.mxu0 %v2063
    %2724 = vmatpush.bf16.msra.mxu0 %v2055
    %2725 = vmatpush.bf16.msra.mxu0 %v2047
    %2726 = vmatpush.bf16.msra.mxu0 %v2039
    %2727 = vmatpush.bf16.msra.mxu0 %v2031
    %2728 = vmatpush.bf16.msra.mxu0 %v2023
    %2729 = vmatpush.bf16.msra.mxu0 %v2015
    %2730 = vmatpush.bf16.msra.mxu0 %v2007
    %2731 = vmatmul.bf16.gmra.mxu0 %v763
    %v2732 = vpop.f32.mrf.mxu0
    %v2733 = vadd.f32 %v2720, %v2732
    %v2734 = vpop.f32.mrf.mxu0
    %2735 = vdwg.mxu0
    %v2736 = vadd.f32 %v2369, %v2421
    %v2737 = vadd.f32 %v2736, %v2473
    %v2738 = vadd.f32 %v2737, %v2525
    %v2739 = vadd.f32 %v2738, %v2577
    %v2740 = vadd.f32 %v2739, %v2629
    %v2741 = vadd.f32 %v2740, %v2681
    %v2742 = vadd.f32 %v2741, %v2733
    %2743 = vadd.xlane.f32.xlu0 %v2742
    %v2744 = vpop.xlane.xlu0 %2743
    %v2745 = vrcp.pop 1024.0
    %v2746 = vmul.f32 1024.0, %v2745
    %v2747 = vsub.f32 1.0, %v2746
    %v2748 = vmul.f32 %v2745, %v2747
    %v2749 = vadd.f32 %v2745, %v2748
    %vm2750 = vweird.f32 %v2745
    %v2751 = vsel %vm2750, %v2745, %v2749
    %v2752 = vmul.f32 %v2744, %v2751
    %v2753 = vmul.f32 %v2369, %v2369
    %v2754 = vmul.f32 %v2421, %v2421
    %v2755 = vmul.f32 %v2473, %v2473
    %v2756 = vmul.f32 %v2525, %v2525
    %v2757 = vmul.f32 %v2577, %v2577
    %v2758 = vmul.f32 %v2629, %v2629
    %v2759 = vmul.f32 %v2681, %v2681
    %v2760 = vmul.f32 %v2733, %v2733
    %v2761 = vadd.f32 %v2753, %v2754
    %v2762 = vadd.f32 %v2761, %v2755
    %v2763 = vadd.f32 %v2762, %v2756
    %v2764 = vadd.f32 %v2763, %v2757
    %v2765 = vadd.f32 %v2764, %v2758
    %v2766 = vadd.f32 %v2765, %v2759
    %v2767 = vadd.f32 %v2766, %v2760
    %2768 = vadd.xlane.f32.xlu0 %v2767
    %v2769 = vpop.xlane.xlu0 %2768
    %v2770 = vmul.f32 %v2769, %v2751
    %v2771 = vmul.f32 %v2752, %v2752
    %v2772 = vsub.f32 %v2770, %v2771
    %v2773 = vmax.f32 %v2772, 0.0
    %v2774 = vsub.f32 %v2369, %v2752
    %v2775 = vsub.f32 %v2421, %v2752
    %v2776 = vsub.f32 %v2473, %v2752
    %v2777 = vsub.f32 %v2525, %v2752
    %v2778 = vsub.f32 %v2577, %v2752
    %v2779 = vsub.f32 %v2629, %v2752
    %v2780 = vsub.f32 %v2681, %v2752
    %v2781 = vsub.f32 %v2733, %v2752
    %v2782 = vadd.f32 %v2773, 1e-05
    %v2783 = vrsqrt.pop %v2782
    %v2784 = vmul.f32 %v2783, %v2782
    %v2785 = vmul.f32 %v2784, %v2783
    %v2786 = vmul.f32 0.5, %v2785
    %v2787 = vsub.f32 1.5, %v2786
    %v2788 = vmul.f32 %v2783, %v2787
    %vm2789 = vweird.f32 %v2782
    %vm2790 = vweird.f32 %v2783
    %vm2791 = vmor %vm2789, %vm2790
    %v2792 = vsel %vm2791, %v2783, %v2788
    %v2793 = vmul.f32 %v2774, %v2792
    %v2794 = vmul.f32 %v2775, %v2792
    %v2795 = vmul.f32 %v2776, %v2792
    %v2796 = vmul.f32 %v2777, %v2792
    %v2797 = vmul.f32 %v2778, %v2792
    %v2798 = vmul.f32 %v2779, %v2792
    %v2799 = vmul.f32 %v2780, %v2792
    %v2800 = vmul.f32 %v2781, %v2792
    %v2802 = vperm.slane %v1021, 0
    %v2803 = vperm.slane %v1021, 1
    %v2804 = vperm.slane %v1021, 2
    %v2805 = vperm.slane %v1021, 3
    %v2806 = vperm.slane %v1021, 4
    %v2807 = vperm.slane %v1021, 5
    %v2808 = vperm.slane %v1021, 6
    %v2809 = vperm.slane %v1021, 7
    %v2818 = vmul.f32 %v2793, %v2802
    %v2819 = vmul.f32 %v2794, %v2803
    %v2820 = vmul.f32 %v2795, %v2804
    %v2821 = vmul.f32 %v2796, %v2805
    %v2822 = vmul.f32 %v2797, %v2806
    %v2823 = vmul.f32 %v2798, %v2807
    %v2824 = vmul.f32 %v2799, %v2808
    %v2825 = vmul.f32 %v2800, %v2809
    %v2827 = vperm.slane %v1022, 0
    %v2828 = vperm.slane %v1022, 1
    %v2829 = vperm.slane %v1022, 2
    %v2830 = vperm.slane %v1022, 3
    %v2831 = vperm.slane %v1022, 4
    %v2832 = vperm.slane %v1022, 5
    %v2833 = vperm.slane %v1022, 6
    %v2834 = vperm.slane %v1022, 7
    %v2843 = vadd.f32 %v2818, %v2827
    %v2844 = vadd.f32 %v2819, %v2828
    %v2845 = vadd.f32 %v2820, %v2829
    %v2846 = vadd.f32 %v2821, %v2830
    %v2847 = vadd.f32 %v2822, %v2831
    %v2848 = vadd.f32 %v2823, %v2832
    %v2849 = vadd.f32 %v2824, %v2833
    %v2850 = vadd.f32 %v2825, %v2834
    %v2851 = vmax.f32 %v2843, 0.0
    %v2852 = vmax.f32 %v2844, 0.0
    %v2853 = vmax.f32 %v2845, 0.0
    %v2854 = vmax.f32 %v2846, 0.0
    %v2855 = vmax.f32 %v2847, 0.0
    %v2856 = vmax.f32 %v2848, 0.0
    %v2857 = vmax.f32 %v2849, 0.0
    %v2858 = vmax.f32 %v2850, 0.0
    %v2859 = vpack.c.bf16 %v2851, %v2851
    %v2860 = vpack.c.bf16 %v2852, %v2852
    %v2861 = vpack.c.bf16 %v2853, %v2853
    %v2862 = vpack.c.bf16 %v2854, %v2854
    %v2863 = vpack.c.bf16 %v2855, %v2855
    %v2864 = vpack.c.bf16 %v2856, %v2856
    %v2865 = vpack.c.bf16 %v2857, %v2857
    %v2866 = vpack.c.bf16 %v2858, %v2858
    %v2867 = vld [vmem:[%s13] sm:$0xf]
    %v2868 = vld [vmem:[%s13 + $0x4] sm:$0xf]
    %v2869 = vld [vmem:[%s13 + $0x8] sm:$0xf]
    %v2870 = vld [vmem:[%s13 + $0xc] sm:$0xf]
    %v2871 = vld [vmem:[%s13 + $0x10] sm:$0xf]
    %v2872 = vld [vmem:[%s13 + $0x14] sm:$0xf]
    %v2873 = vld [vmem:[%s13 + $0x18] sm:$0xf]
    %v2874 = vld [vmem:[%s13 + $0x1c] sm:$0xf]
    %v2875 = vld [vmem:[%s13 + $0x20] sm:$0xf]
    %v2876 = vld [vmem:[%s13 + $0x24] sm:$0xf]
    %v2877 = vld [vmem:[%s13 + $0x28] sm:$0xf]
    %v2878 = vld [vmem:[%s13 + $0x2c] sm:$0xf]
    %v2879 = vld [vmem:[%s13 + $0x30] sm:$0xf]
    %v2880 = vld [vmem:[%s13 + $0x34] sm:$0xf]
    %v2881 = vld [vmem:[%s13 + $0x38] sm:$0xf]
    %v2882 = vld [vmem:[%s13 + $0x3c] sm:$0xf]
    %v2883 = vld [vmem:[%s13 + $0x40] sm:$0xf]
    %v2884 = vld [vmem:[%s13 + $0x44] sm:$0xf]
    %v2885 = vld [vmem:[%s13 + $0x48] sm:$0xf]
    %v2886 = vld [vmem:[%s13 + $0x4c] sm:$0xf]
    %v2887 = vld [vmem:[%s13 + $0x50] sm:$0xf]
    %v2888 = vld [vmem:[%s13 + $0x54] sm:$0xf]
    %v2889 = vld [vmem:[%s13 + $0x58] sm:$0xf]
    %v2890 = vld [vmem:[%s13 + $0x5c] sm:$0xf]
    %v2891 = vld [vmem:[%s13 + $0x60] sm:$0xf]
    %v2892 = vld [vmem:[%s13 + $0x64] sm:$0xf]
    %v2893 = vld [vmem:[%s13 + $0x68] sm:$0xf]
    %v2894 = vld [vmem:[%s13 + $0x6c] sm:$0xf]
    %v2895 = vld [vmem:[%s13 + $0x70] sm:$0xf]
    %v2896 = vld [vmem:[%s13 + $0x74] sm:$0xf]
    %v2897 = vld [vmem:[%s13 + $0x78] sm:$0xf]
    %v2898 = vld [vmem:[%s13 + $0x7c] sm:$0xf]
    %v2899 = vld [vmem:[%s13 + $0x80] sm:$0xf]
    %v2900 = vld [vmem:[%s13 + $0x84] sm:$0xf]
    %v2901 = vld [vmem:[%s13 + $0x88] sm:$0xf]
    %v2902 = vld [vmem:[%s13 + $0x8c] sm:$0xf]
    %v2903 = vld [vmem:[%s13 + $0x90] sm:$0xf]
    %v2904 = vld [vmem:[%s13 + $0x94] sm:$0xf]
    %v2905 = vld [vmem:[%s13 + $0x98] sm:$0xf]
    %v2906 = vld [vmem:[%s13 + $0x9c] sm:$0xf]
    %v2907 = vld [vmem:[%s13 + $0xa0] sm:$0xf]
    %v2908 = vld [vmem:[%s13 + $0xa4] sm:$0xf]
    %v2909 = vld [vmem:[%s13 + $0xa8] sm:$0xf]
    %v2910 = vld [vmem:[%s13 + $0xac] sm:$0xf]
    %v2911 = vld [vmem:[%s13 + $0xb0] sm:$0xf]
    %v2912 = vld [vmem:[%s13 + $0xb4] sm:$0xf]
    %v2913 = vld [vmem:[%s13 + $0xb8] sm:$0xf]
    %v2914 = vld [vmem:[%s13 + $0xbc] sm:$0xf]
    %v2915 = vld [vmem:[%s13 + $0xc0] sm:$0xf]
    %v2916 = vld [vmem:[%s13 + $0xc4] sm:$0xf]
    %v2917 = vld [vmem:[%s13 + $0xc8] sm:$0xf]
    %v2918 = vld [vmem:[%s13 + $0xcc] sm:$0xf]
    %v2919 = vld [vmem:[%s13 + $0xd0] sm:$0xf]
    %v2920 = vld [vmem:[%s13 + $0xd4] sm:$0xf]
    %v2921 = vld [vmem:[%s13 + $0xd8] sm:$0xf]
    %v2922 = vld [vmem:[%s13 + $0xdc] sm:$0xf]
    %v2923 = vld [vmem:[%s13 + $0xe0] sm:$0xf]
    %v2924 = vld [vmem:[%s13 + $0xe4] sm:$0xf]
    %v2925 = vld [vmem:[%s13 + $0xe8] sm:$0xf]
    %v2926 = vld [vmem:[%s13 + $0xec] sm:$0xf]
    %v2927 = vld [vmem:[%s13 + $0xf0] sm:$0xf]
    %v2928 = vld [vmem:[%s13 + $0xf4] sm:$0xf]
    %v2929 = vld [vmem:[%s13 + $0xf8] sm:$0xf]
    %v2930 = vld [vmem:[%s13 + $0xfc] sm:$0xf]
    %v2931 = vld [vmem:[%s13 + $0x100] sm:$0xf]
    %v2932 = vld [vmem:[%s13 + $0x104] sm:$0xf]
    %v2933 = vld [vmem:[%s13 + $0x108] sm:$0xf]
    %v2934 = vld [vmem:[%s13 + $0x10c] sm:$0xf]
    %v2935 = vld [vmem:[%s13 + $0x110] sm:$0xf]
    %v2936 = vld [vmem:[%s13 + $0x114] sm:$0xf]
    %v2937 = vld [vmem:[%s13 + $0x118] sm:$0xf]
    %v2938 = vld [vmem:[%s13 + $0x11c] sm:$0xf]
    %v2939 = vld [vmem:[%s13 + $0x120] sm:$0xf]
    %v2940 = vld [vmem:[%s13 + $0x124] sm:$0xf]
    %v2941 = vld [vmem:[%s13 + $0x128] sm:$0xf]
    %v2942 = vld [vmem:[%s13 + $0x12c] sm:$0xf]
    %v2943 = vld [vmem:[%s13 + $0x130] sm:$0xf]
    %v2944 = vld [vmem:[%s13 + $0x134] sm:$0xf]
    %v2945 = vld [vmem:[%s13 + $0x138] sm:$0xf]
    %v2946 = vld [vmem:[%s13 + $0x13c] sm:$0xf]
    %v2947 = vld [vmem:[%s13 + $0x140] sm:$0xf]
    %v2948 = vld [vmem:[%s13 + $0x144] sm:$0xf]
    %v2949 = vld [vmem:[%s13 + $0x148] sm:$0xf]
    %v2950 = vld [vmem:[%s13 + $0x14c] sm:$0xf]
    %v2951 = vld [vmem:[%s13 + $0x150] sm:$0xf]
    %v2952 = vld [vmem:[%s13 + $0x154] sm:$0xf]
    %v2953 = vld [vmem:[%s13 + $0x158] sm:$0xf]
    %v2954 = vld [vmem:[%s13 + $0x15c] sm:$0xf]
    %v2955 = vld [vmem:[%s13 + $0x160] sm:$0xf]
    %v2956 = vld [vmem:[%s13 + $0x164] sm:$0xf]
    %v2957 = vld [vmem:[%s13 + $0x168] sm:$0xf]
    %v2958 = vld [vmem:[%s13 + $0x16c] sm:$0xf]
    %v2959 = vld [vmem:[%s13 + $0x170] sm:$0xf]
    %v2960 = vld [vmem:[%s13 + $0x174] sm:$0xf]
    %v2961 = vld [vmem:[%s13 + $0x178] sm:$0xf]
    %v2962 = vld [vmem:[%s13 + $0x17c] sm:$0xf]
    %v2963 = vld [vmem:[%s13 + $0x180] sm:$0xf]
    %v2964 = vld [vmem:[%s13 + $0x184] sm:$0xf]
    %v2965 = vld [vmem:[%s13 + $0x188] sm:$0xf]
    %v2966 = vld [vmem:[%s13 + $0x18c] sm:$0xf]
    %v2967 = vld [vmem:[%s13 + $0x190] sm:$0xf]
    %v2968 = vld [vmem:[%s13 + $0x194] sm:$0xf]
    %v2969 = vld [vmem:[%s13 + $0x198] sm:$0xf]
    %v2970 = vld [vmem:[%s13 + $0x19c] sm:$0xf]
    %v2971 = vld [vmem:[%s13 + $0x1a0] sm:$0xf]
    %v2972 = vld [vmem:[%s13 + $0x1a4] sm:$0xf]
    %v2973 = vld [vmem:[%s13 + $0x1a8] sm:$0xf]
    %v2974 = vld [vmem:[%s13 + $0x1ac] sm:$0xf]
    %v2975 = vld [vmem:[%s13 + $0x1b0] sm:$0xf]
    %v2976 = vld [vmem:[%s13 + $0x1b4] sm:$0xf]
    %v2977 = vld [vmem:[%s13 + $0x1b8] sm:$0xf]
    %v2978 = vld [vmem:[%s13 + $0x1bc] sm:$0xf]
    %v2979 = vld [vmem:[%s13 + $0x1c0] sm:$0xf]
    %v2980 = vld [vmem:[%s13 + $0x1c4] sm:$0xf]
    %v2981 = vld [vmem:[%s13 + $0x1c8] sm:$0xf]
    %v2982 = vld [vmem:[%s13 + $0x1cc] sm:$0xf]
    %v2983 = vld [vmem:[%s13 + $0x1d0] sm:$0xf]
    %v2984 = vld [vmem:[%s13 + $0x1d4] sm:$0xf]
    %v2985 = vld [vmem:[%s13 + $0x1d8] sm:$0xf]
    %v2986 = vld [vmem:[%s13 + $0x1dc] sm:$0xf]
    %v2987 = vld [vmem:[%s13 + $0x1e0] sm:$0xf]
    %v2988 = vld [vmem:[%s13 + $0x1e4] sm:$0xf]
    %v2989 = vld [vmem:[%s13 + $0x1e8] sm:$0xf]
    %v2990 = vld [vmem:[%s13 + $0x1ec] sm:$0xf]
    %v2991 = vld [vmem:[%s13 + $0x1f0] sm:$0xf]
    %v2992 = vld [vmem:[%s13 + $0x1f4] sm:$0xf]
    %v2993 = vld [vmem:[%s13 + $0x1f8] sm:$0xf]
    %v2994 = vld [vmem:[%s13 + $0x1fc] sm:$0xf]
    %v2995 = vld [vmem:[%s14] sm:$0x1]
    %v2997 = vperm.slane %v2995, 0
    %v3127 = vunpack.c.l.b16 %v2867
    %v3128 = vunpack.c.l.b16 %v2868
    %v3129 = vunpack.c.l.b16 %v2869
    %v3130 = vunpack.c.l.b16 %v2870
    %v3131 = vunpack.c.l.b16 %v2871
    %v3132 = vunpack.c.l.b16 %v2872
    %v3133 = vunpack.c.l.b16 %v2873
    %v3134 = vunpack.c.l.b16 %v2874
    %v3135 = vunpack.c.l.b16 %v2875
    %v3136 = vunpack.c.l.b16 %v2876
    %v3137 = vunpack.c.l.b16 %v2877
    %v3138 = vunpack.c.l.b16 %v2878
    %v3139 = vunpack.c.l.b16 %v2879
    %v3140 = vunpack.c.l.b16 %v2880
    %v3141 = vunpack.c.l.b16 %v2881
    %v3142 = vunpack.c.l.b16 %v2882
    %v3143 = vunpack.c.l.b16 %v2883
    %v3144 = vunpack.c.l.b16 %v2884
    %v3145 = vunpack.c.l.b16 %v2885
    %v3146 = vunpack.c.l.b16 %v2886
    %v3147 = vunpack.c.l.b16 %v2887
    %v3148 = vunpack.c.l.b16 %v2888
    %v3149 = vunpack.c.l.b16 %v2889
    %v3150 = vunpack.c.l.b16 %v2890
    %v3151 = vunpack.c.l.b16 %v2891
    %v3152 = vunpack.c.l.b16 %v2892
    %v3153 = vunpack.c.l.b16 %v2893
    %v3154 = vunpack.c.l.b16 %v2894
    %v3155 = vunpack.c.l.b16 %v2895
    %v3156 = vunpack.c.l.b16 %v2896
    %v3157 = vunpack.c.l.b16 %v2897
    %v3158 = vunpack.c.l.b16 %v2898
    %v3159 = vunpack.c.l.b16 %v2899
    %v3160 = vunpack.c.l.b16 %v2900
    %v3161 = vunpack.c.l.b16 %v2901
    %v3162 = vunpack.c.l.b16 %v2902
    %v3163 = vunpack.c.l.b16 %v2903
    %v3164 = vunpack.c.l.b16 %v2904
    %v3165 = vunpack.c.l.b16 %v2905
    %v3166 = vunpack.c.l.b16 %v2906
    %v3167 = vunpack.c.l.b16 %v2907
    %v3168 = vunpack.c.l.b16 %v2908
    %v3169 = vunpack.c.l.b16 %v2909
    %v3170 = vunpack.c.l.b16 %v2910
    %v3171 = vunpack.c.l.b16 %v2911
    %v3172 = vunpack.c.l.b16 %v2912
    %v3173 = vunpack.c.l.b16 %v2913
    %v3174 = vunpack.c.l.b16 %v2914
    %v3175 = vunpack.c.l.b16 %v2915
    %v3176 = vunpack.c.l.b16 %v2916
    %v3177 = vunpack.c.l.b16 %v2917
    %v3178 = vunpack.c.l.b16 %v2918
    %v3179 = vunpack.c.l.b16 %v2919
    %v3180 = vunpack.c.l.b16 %v2920
    %v3181 = vunpack.c.l.b16 %v2921
    %v3182 = vunpack.c.l.b16 %v2922
    %v3183 = vunpack.c.l.b16 %v2923
    %v3184 = vunpack.c.l.b16 %v2924
    %v3185 = vunpack.c.l.b16 %v2925
    %v3186 = vunpack.c.l.b16 %v2926
    %v3187 = vunpack.c.l.b16 %v2927
    %v3188 = vunpack.c.l.b16 %v2928
    %v3189 = vunpack.c.l.b16 %v2929
    %v3190 = vunpack.c.l.b16 %v2930
    %v3191 = vunpack.c.l.b16 %v2931
    %v3192 = vunpack.c.l.b16 %v2932
    %v3193 = vunpack.c.l.b16 %v2933
    %v3194 = vunpack.c.l.b16 %v2934
    %v3195 = vunpack.c.l.b16 %v2935
    %v3196 = vunpack.c.l.b16 %v2936
    %v3197 = vunpack.c.l.b16 %v2937
    %v3198 = vunpack.c.l.b16 %v2938
    %v3199 = vunpack.c.l.b16 %v2939
    %v3200 = vunpack.c.l.b16 %v2940
    %v3201 = vunpack.c.l.b16 %v2941
    %v3202 = vunpack.c.l.b16 %v2942
    %v3203 = vunpack.c.l.b16 %v2943
    %v3204 = vunpack.c.l.b16 %v2944
    %v3205 = vunpack.c.l.b16 %v2945
    %v3206 = vunpack.c.l.b16 %v2946
    %v3207 = vunpack.c.l.b16 %v2947
    %v3208 = vunpack.c.l.b16 %v2948
    %v3209 = vunpack.c.l.b16 %v2949
    %v3210 = vunpack.c.l.b16 %v2950
    %v3211 = vunpack.c.l.b16 %v2951
    %v3212 = vunpack.c.l.b16 %v2952
    %v3213 = vunpack.c.l.b16 %v2953
    %v3214 = vunpack.c.l.b16 %v2954
    %v3215 = vunpack.c.l.b16 %v2955
    %v3216 = vunpack.c.l.b16 %v2956
    %v3217 = vunpack.c.l.b16 %v2957
    %v3218 = vunpack.c.l.b16 %v2958
    %v3219 = vunpack.c.l.b16 %v2959
    %v3220 = vunpack.c.l.b16 %v2960
    %v3221 = vunpack.c.l.b16 %v2961
    %v3222 = vunpack.c.l.b16 %v2962
    %v3223 = vunpack.c.l.b16 %v2963
    %v3224 = vunpack.c.l.b16 %v2964
    %v3225 = vunpack.c.l.b16 %v2965
    %v3226 = vunpack.c.l.b16 %v2966
    %v3227 = vunpack.c.l.b16 %v2967
    %v3228 = vunpack.c.l.b16 %v2968
    %v3229 = vunpack.c.l.b16 %v2969
    %v3230 = vunpack.c.l.b16 %v2970
    %v3231 = vunpack.c.l.b16 %v2971
    %v3232 = vunpack.c.l.b16 %v2972
    %v3233 = vunpack.c.l.b16 %v2973
    %v3234 = vunpack.c.l.b16 %v2974
    %v3235 = vunpack.c.l.b16 %v2975
    %v3236 = vunpack.c.l.b16 %v2976
    %v3237 = vunpack.c.l.b16 %v2977
    %v3238 = vunpack.c.l.b16 %v2978
    %v3239 = vunpack.c.l.b16 %v2979
    %v3240 = vunpack.c.l.b16 %v2980
    %v3241 = vunpack.c.l.b16 %v2981
    %v3242 = vunpack.c.l.b16 %v2982
    %v3243 = vunpack.c.l.b16 %v2983
    %v3244 = vunpack.c.l.b16 %v2984
    %v3245 = vunpack.c.l.b16 %v2985
    %v3246 = vunpack.c.l.b16 %v2986
    %v3247 = vunpack.c.l.b16 %v2987
    %v3248 = vunpack.c.l.b16 %v2988
    %v3249 = vunpack.c.l.b16 %v2989
    %v3250 = vunpack.c.l.b16 %v2990
    %v3251 = vunpack.c.l.b16 %v2991
    %v3252 = vunpack.c.l.b16 %v2992
    %v3253 = vunpack.c.l.b16 %v2993
    %v3254 = vunpack.c.l.b16 %v2994
    %v3255 = vpack.c.b16 %v3128, %v3127
    %v3256 = vpack.c.b16 %v3130, %v3129
    %v3257 = vpack.c.b16 %v3132, %v3131
    %v3258 = vpack.c.b16 %v3134, %v3133
    %v3259 = vpack.c.b16 %v3136, %v3135
    %v3260 = vpack.c.b16 %v3138, %v3137
    %v3261 = vpack.c.b16 %v3140, %v3139
    %v3262 = vpack.c.b16 %v3142, %v3141
    %v3263 = vpack.c.b16 %v3144, %v3143
    %v3264 = vpack.c.b16 %v3146, %v3145
    %v3265 = vpack.c.b16 %v3148, %v3147
    %v3266 = vpack.c.b16 %v3150, %v3149
    %v3267 = vpack.c.b16 %v3152, %v3151
    %v3268 = vpack.c.b16 %v3154, %v3153
    %v3269 = vpack.c.b16 %v3156, %v3155
    %v3270 = vpack.c.b16 %v3158, %v3157
    %v3271 = vpack.c.b16 %v3160, %v3159
    %v3272 = vpack.c.b16 %v3162, %v3161
    %v3273 = vpack.c.b16 %v3164, %v3163
    %v3274 = vpack.c.b16 %v3166, %v3165
    %v3275 = vpack.c.b16 %v3168, %v3167
    %v3276 = vpack.c.b16 %v3170, %v3169
    %v3277 = vpack.c.b16 %v3172, %v3171
    %v3278 = vpack.c.b16 %v3174, %v3173
    %v3279 = vpack.c.b16 %v3176, %v3175
    %v3280 = vpack.c.b16 %v3178, %v3177
    %v3281 = vpack.c.b16 %v3180, %v3179
    %v3282 = vpack.c.b16 %v3182, %v3181
    %v3283 = vpack.c.b16 %v3184, %v3183
    %v3284 = vpack.c.b16 %v3186, %v3185
    %v3285 = vpack.c.b16 %v3188, %v3187
    %v3286 = vpack.c.b16 %v3190, %v3189
    %v3287 = vpack.c.b16 %v3192, %v3191
    %v3288 = vpack.c.b16 %v3194, %v3193
    %v3289 = vpack.c.b16 %v3196, %v3195
    %v3290 = vpack.c.b16 %v3198, %v3197
    %v3291 = vpack.c.b16 %v3200, %v3199
    %v3292 = vpack.c.b16 %v3202, %v3201
    %v3293 = vpack.c.b16 %v3204, %v3203
    %v3294 = vpack.c.b16 %v3206, %v3205
    %v3295 = vpack.c.b16 %v3208, %v3207
    %v3296 = vpack.c.b16 %v3210, %v3209
    %v3297 = vpack.c.b16 %v3212, %v3211
    %v3298 = vpack.c.b16 %v3214, %v3213
    %v3299 = vpack.c.b16 %v3216, %v3215
    %v3300 = vpack.c.b16 %v3218, %v3217
    %v3301 = vpack.c.b16 %v3220, %v3219
    %v3302 = vpack.c.b16 %v3222, %v3221
    %v3303 = vpack.c.b16 %v3224, %v3223
    %v3304 = vpack.c.b16 %v3226, %v3225
    %v3305 = vpack.c.b16 %v3228, %v3227
    %v3306 = vpack.c.b16 %v3230, %v3229
    %v3307 = vpack.c.b16 %v3232, %v3231
    %v3308 = vpack.c.b16 %v3234, %v3233
    %v3309 = vpack.c.b16 %v3236, %v3235
    %v3310 = vpack.c.b16 %v3238, %v3237
    %v3311 = vpack.c.b16 %v3240, %v3239
    %v3312 = vpack.c.b16 %v3242, %v3241
    %v3313 = vpack.c.b16 %v3244, %v3243
    %v3314 = vpack.c.b16 %v3246, %v3245
    %v3315 = vpack.c.b16 %v3248, %v3247
    %v3316 = vpack.c.b16 %v3250, %v3249
    %v3317 = vpack.c.b16 %v3252, %v3251
    %v3318 = vpack.c.b16 %v3254, %v3253
    %3383 = vmatpush.bf16.msra.mxu0 %v3262
    %3384 = vmatpush.bf16.msra.mxu0 %v3261
    %3385 = vmatpush.bf16.msra.mxu0 %v3260
    %3386 = vmatpush.bf16.msra.mxu0 %v3259
    %3387 = vmatpush.bf16.msra.mxu0 %v3258
    %3388 = vmatpush.bf16.msra.mxu0 %v3257
    %3389 = vmatpush.bf16.msra.mxu0 %v3256
    %3390 = vmatpush.bf16.msra.mxu0 %v3255
    %3391 = vmatmul.bf16.gmra.mxu0 %v2859
    %v3392 = vpop.f32.mrf.mxu0
    %v3393 = vadd.f32 %v2997, %v3392
    %v3394 = vpop.f32.mrf.mxu0
    %3395 = vdwg.mxu0
    %3396 = vmatpush.bf16.msra.mxu0 %v3270
    %3397 = vmatpush.bf16.msra.mxu0 %v3269
    %3398 = vmatpush.bf16.msra.mxu0 %v3268
    %3399 = vmatpush.bf16.msra.mxu0 %v3267
    %3400 = vmatpush.bf16.msra.mxu0 %v3266
    %3401 = vmatpush.bf16.msra.mxu0 %v3265
    %3402 = vmatpush.bf16.msra.mxu0 %v3264
    %3403 = vmatpush.bf16.msra.mxu0 %v3263
    %3404 = vmatmul.bf16.gmra.mxu0 %v2860
    %v3405 = vpop.f32.mrf.mxu0
    %v3406 = vadd.f32 %v3393, %v3405
    %v3407 = vpop.f32.mrf.mxu0
    %3408 = vdwg.mxu0
    %3409 = vmatpush.bf16.msra.mxu0 %v3278
    %3410 = vmatpush.bf16.msra.mxu0 %v3277
    %3411 = vmatpush.bf16.msra.mxu0 %v3276
    %3412 = vmatpush.bf16.msra.mxu0 %v3275
    %3413 = vmatpush.bf16.msra.mxu0 %v3274
    %3414 = vmatpush.bf16.msra.mxu0 %v3273
    %3415 = vmatpush.bf16.msra.mxu0 %v3272
    %3416 = vmatpush.bf16.msra.mxu0 %v3271
    %3417 = vmatmul.bf16.gmra.mxu0 %v2861
    %v3418 = vpop.f32.mrf.mxu0
    %v3419 = vadd.f32 %v3406, %v3418
    %v3420 = vpop.f32.mrf.mxu0
    %3421 = vdwg.mxu0
    %3422 = vmatpush.bf16.msra.mxu0 %v3286
    %3423 = vmatpush.bf16.msra.mxu0 %v3285
    %3424 = vmatpush.bf16.msra.mxu0 %v3284
    %3425 = vmatpush.bf16.msra.mxu0 %v3283
    %3426 = vmatpush.bf16.msra.mxu0 %v3282
    %3427 = vmatpush.bf16.msra.mxu0 %v3281
    %3428 = vmatpush.bf16.msra.mxu0 %v3280
    %3429 = vmatpush.bf16.msra.mxu0 %v3279
    %3430 = vmatmul.bf16.gmra.mxu0 %v2862
    %v3431 = vpop.f32.mrf.mxu0
    %v3432 = vadd.f32 %v3419, %v3431
    %v3433 = vpop.f32.mrf.mxu0
    %3434 = vdwg.mxu0
    %3435 = vmatpush.bf16.msra.mxu0 %v3294
    %3436 = vmatpush.bf16.msra.mxu0 %v3293
    %3437 = vmatpush.bf16.msra.mxu0 %v3292
    %3438 = vmatpush.bf16.msra.mxu0 %v3291
    %3439 = vmatpush.bf16.msra.mxu0 %v3290
    %3440 = vmatpush.bf16.msra.mxu0 %v3289
    %3441 = vmatpush.bf16.msra.mxu0 %v3288
    %3442 = vmatpush.bf16.msra.mxu0 %v3287
    %3443 = vmatmul.bf16.gmra.mxu0 %v2863
    %v3444 = vpop.f32.mrf.mxu0
    %v3445 = vadd.f32 %v3432, %v3444
    %v3446 = vpop.f32.mrf.mxu0
    %3447 = vdwg.mxu0
    %3448 = vmatpush.bf16.msra.mxu0 %v3302
    %3449 = vmatpush.bf16.msra.mxu0 %v3301
    %3450 = vmatpush.bf16.msra.mxu0 %v3300
    %3451 = vmatpush.bf16.msra.mxu0 %v3299
    %3452 = vmatpush.bf16.msra.mxu0 %v3298
    %3453 = vmatpush.bf16.msra.mxu0 %v3297
    %3454 = vmatpush.bf16.msra.mxu0 %v3296
    %3455 = vmatpush.bf16.msra.mxu0 %v3295
    %3456 = vmatmul.bf16.gmra.mxu0 %v2864
    %v3457 = vpop.f32.mrf.mxu0
    %v3458 = vadd.f32 %v3445, %v3457
    %v3459 = vpop.f32.mrf.mxu0
    %3460 = vdwg.mxu0
    %3461 = vmatpush.bf16.msra.mxu0 %v3310
    %3462 = vmatpush.bf16.msra.mxu0 %v3309
    %3463 = vmatpush.bf16.msra.mxu0 %v3308
    %3464 = vmatpush.bf16.msra.mxu0 %v3307
    %3465 = vmatpush.bf16.msra.mxu0 %v3306
    %3466 = vmatpush.bf16.msra.mxu0 %v3305
    %3467 = vmatpush.bf16.msra.mxu0 %v3304
    %3468 = vmatpush.bf16.msra.mxu0 %v3303
    %3469 = vmatmul.bf16.gmra.mxu0 %v2865
    %v3470 = vpop.f32.mrf.mxu0
    %v3471 = vadd.f32 %v3458, %v3470
    %v3472 = vpop.f32.mrf.mxu0
    %3473 = vdwg.mxu0
    %3474 = vmatpush.bf16.msra.mxu0 %v3318
    %3475 = vmatpush.bf16.msra.mxu0 %v3317
    %3476 = vmatpush.bf16.msra.mxu0 %v3316
    %3477 = vmatpush.bf16.msra.mxu0 %v3315
    %3478 = vmatpush.bf16.msra.mxu0 %v3314
    %3479 = vmatpush.bf16.msra.mxu0 %v3313
    %3480 = vmatpush.bf16.msra.mxu0 %v3312
    %3481 = vmatpush.bf16.msra.mxu0 %v3311
    %3482 = vmatmul.bf16.gmra.mxu0 %v2866
    %v3483 = vpop.f32.mrf.mxu0
    %v3484 = vadd.f32 %v3471, %v3483
    %v3485 = vpop.f32.mrf.mxu0
    %3486 = vdwg.mxu0
    %v3487 = vtanh.pop %v3484
    %3488 = vst.msk [vmem:[#allocation5] sm:$0xff] %vm102, %v3487
    // Predicated region
    $region66: #{tpu_custom_call.1} parent=1 // pred_check
      _
    $region67: #{tpu_custom_call.1} parent=1 // pred_check_branch
      %3490 = sbr.rel (0) target = $region69
    $region68: #{tpu_custom_call.1} parent=1 // pred_region
      %3492 = vsyncadd [#allocation4], 0
      %s3494 = sshll.u32 [#allocation5], 4
      %s3495 = int_to_ptr.vmem [resolvable:$true] %s3494
      %s3496 = sshll.u32 %s15, 4
      %s3497 = int_to_ptr.hbm [resolvable:$true] %s3496
      %3499 = dma.vmem_to_hbm [thread:$0]  %s3495, 128, %s3497, [#allocation4]
    $region69: #{tpu_custom_call.1} parent=1 // pred_fallthru
      _
    // Predicated region
    $region70: #{tpu_custom_call.1} parent=1 // pred_check
      _
    $region71: #{tpu_custom_call.1} parent=1 // pred_check_branch
      %3501 = sbr.rel (0) target = $region73
    $region72: #{tpu_custom_call.1} parent=1 // pred_region
      %3503 = dma.done [#allocation4], 128
    $region73: #{tpu_custom_call.1} parent=1 // pred_fallthru
      _
    %3504 = vsyncpa [#allocation3], 1
    %3505 = vsyncpa [#allocation4], 1

</llo_original>
